<compile_context>
chip_gen: v7x
topology: tpu7x:2x2x1
jax: 0.10.0
libtpu: 0.0.40
codegen_flags: <defaults>
</compile_context>

<pallas_src>
import jax
import jax.numpy as jnp
import numpy as np
from jax import lax
from jax.experimental import pallas as pl
from jax.experimental.pallas import tpu as pltpu


def se_basic_block_kernel(
    xrow_ref,    # (H+2, W*C) f32   row-padded input (one batch element)
    xres_ref,    # (H,   W*C) f32   unpadded input (residual path)
    w1_ref,      # (3, W*C, W*P) bf16  conv1 block-Toeplitz rows (BN1 scale folded)
    bn1b_ref,    # (1, W*P) f32        BN1 bias, tiled over W
    wse1_ref,    # (W*P, Hd) f32       SE fc1 with avg-pool-over-W folded in
    wse2_ref,    # (Hd, W*P) f32       SE fc2, pre-tiled over W
    w2_ref,      # (3, W*P, W*C) bf16  conv2 block-Toeplitz rows (BN2 scale folded)
    bn2b_ref,    # (1, W*C) f32
    out_ref,     # (H, W*C) f32
    ypad_ref,    # scratch VMEM (H+2, W*P) f32
):
    H = out_ref.shape[0]
    WP = ypad_ref.shape[1]
    bf16 = jnp.bfloat16
    f32 = jnp.float32

    # ---- conv1 + BN1: three lane-dense MXU matmuls (one per kernel row) ----
    acc1 = jnp.dot(xrow_ref[0:H, :].astype(bf16), w1_ref[0],
                   preferred_element_type=f32)
    acc1 = acc1 + jnp.dot(xrow_ref[1:H + 1, :].astype(bf16), w1_ref[1],
                          preferred_element_type=f32)
    acc1 = acc1 + jnp.dot(xrow_ref[2:H + 2, :].astype(bf16), w1_ref[2],
                          preferred_element_type=f32)
    y = acc1 + bn1b_ref[...]                       # (H, W*P)

    # ---- SE: pool -> fc1 -> relu -> fc2 -> sigmoid -> channel scale ----
    m = jnp.mean(y, axis=0, keepdims=True)         # (1, W*P): mean over rows
    s = jnp.dot(m, wse1_ref[...], preferred_element_type=f32)   # (1, Hd)
    s = jnp.maximum(s, 0.0)
    s = jnp.dot(s, wse2_ref[...], preferred_element_type=f32)   # (1, W*P)
    s = jax.nn.sigmoid(s)
    y = jnp.maximum(y * s, 0.0)                    # SE scale + ReLU

    # ---- conv2 input: only vertical zero-padding needs the scratch ----
    # (left/right padding is folded into the Toeplitz weights).  Zero rows are
    # rewritten every step; interior rows are fully overwritten.
    ypad_ref[0:1, :] = jnp.zeros((1, WP), f32)
    ypad_ref[H + 1:H + 2, :] = jnp.zeros((1, WP), f32)
    ypad_ref[1:H + 1, :] = y

    # ---- conv2 + BN2 bias + residual + ReLU ----
    acc2 = jnp.dot(y.astype(bf16), w2_ref[1],                     # center row tap
                   preferred_element_type=f32)
    acc2 = acc2 + jnp.dot(ypad_ref[0:H, :].astype(bf16), w2_ref[0],
                          preferred_element_type=f32)
    acc2 = acc2 + jnp.dot(ypad_ref[2:H + 2, :].astype(bf16), w2_ref[2],
                          preferred_element_type=f32)

    out_ref[...] = jnp.maximum(acc2 + bn2b_ref[...] + xres_ref[...], 0.0)


def se_basic_block_pallas(x_nchw, params):
    """x_nchw: (N, C, H, W) float32.  Returns (N, C, H, W)."""
    (w1, g1, b1, rm1, rv1, wse1, wse2, w2, g2, b2, rm2, rv2, eps) = params
    N, C, H, W = x_nchw.shape
    P = w1.shape[0]
    Hd = wse1.shape[0]
    WC, WP = W * C, W * P
    f32 = jnp.float32
    hp = lax.Precision.HIGHEST

    # --- layout: NCHW -> row-flattened NHWC (lane-dense, last dim = W*C) ---
    x_nhwc = jnp.transpose(x_nchw, (0, 2, 3, 1))                       # (N,H,W,C)
    x_res = x_nhwc.reshape(N, H, WC).astype(f32)                       # residual
    x_rows = jnp.pad(x_nhwc, ((0, 0), (1, 1), (0, 0), (0, 0)))         # pad H only
    x_rows = x_rows.reshape(N, H + 2, WC).astype(f32)

    # --- fold inference BatchNorm (running stats) into conv weights/bias ---
    s1 = g1 / jnp.sqrt(rv1 + eps)
    s2 = g2 / jnp.sqrt(rv2 + eps)
    bias1 = b1 - rm1 * s1
    bias2 = b2 - rm2 * s2
    k1 = w1 * s1[:, None, None, None]                                  # (P,C,3,3)
    k2 = w2 * s2[:, None, None, None]                                  # (C,P,3,3)

    # --- block-Toeplitz conv weights: (3, W*Cin, W*Cout), one per kernel row.
    # wsel[w_in, w_out, kw] = 1 iff w_in == w_out + kw - 1 (zero padding in W
    # is absorbed as zero weight entries).
    wsel = (jnp.arange(3)[None, None, :] ==
            (jnp.arange(W)[:, None, None] - jnp.arange(W)[None, :, None] + 1)
            ).astype(f32)                                              # (W, W, 3)
    k1t = jnp.transpose(k1, (2, 3, 1, 0))                              # (kh,kw,C,P)
    w1_rows = jnp.einsum('vwk,akcp->avcwp', wsel, k1t,
                         precision=hp).reshape(3, WC, WP).astype(jnp.bfloat16)
    k2t = jnp.transpose(k2, (2, 3, 1, 0))                              # (kh,kw,P,C)
    w2_rows = jnp.einsum('vwk,akpc->avpwc', wsel, k2t,
                         precision=hp).reshape(3, WP, WC).astype(jnp.bfloat16)

    bn1b = jnp.tile(bias1, W).reshape(1, WP).astype(f32)
    bn2b = jnp.tile(bias2, W).reshape(1, WC).astype(f32)

    # --- SE weights: fold avg-pool over W into fc1, pre-tile fc2 over W ---
    wse1_eff = (jnp.tile(wse1.T, (W, 1)) / W).astype(f32)              # (W*P, Hd)
    wse2_eff = jnp.tile(wse2.T, (1, W)).astype(f32)                    # (Hd, W*P)

    const = lambda shape: pl.BlockSpec(shape, lambda b, _s=len(shape): (0,) * _s)

    out_flat = pl.pallas_call(
        se_basic_block_kernel,
        out_shape=jax.ShapeDtypeStruct((N, H, WC), f32),
        grid=(N,),
        in_specs=[
            pl.BlockSpec((None, H + 2, WC), lambda b: (b, 0, 0)),
            pl.BlockSpec((None, H, WC), lambda b: (b, 0, 0)),
            const((3, WC, WP)),
            const((1, WP)),
            const((WP, Hd)),
            const((Hd, WP)),
            const((3, WP, WC)),
            const((1, WC)),
        ],
        out_specs=pl.BlockSpec((None, H, WC), lambda b: (b, 0, 0)),
        scratch_shapes=[pltpu.VMEM((H + 2, WP), f32)],
        compiler_params=pltpu.CompilerParams(
            dimension_semantics=("parallel",)),   # v7x: shard batch over 2 TCs
    )(x_rows, x_res, w1_rows, bn1b, wse1_eff, wse2_eff, w2_rows, bn2b)

    return jnp.transpose(out_flat.reshape(N, H, W, C), (0, 3, 1, 2))


def se_basic_block_reference(x, params):
    """Pure-JAX f32 reference (NCHW), mirrors the PyTorch forward."""
    (w1, g1, b1, rm1, rv1, wse1, wse2, w2, g2, b2, rm2, rv2, eps) = params
    dn = ("NCHW", "OIHW", "NCHW")
    hp = lax.Precision.HIGHEST

    out = lax.conv_general_dilated(x, w1, (1, 1), ((1, 1), (1, 1)),
                                   dimension_numbers=dn, precision=hp)
    out = ((out - rm1[None, :, None, None])
           * (g1 / jnp.sqrt(rv1 + eps))[None, :, None, None]
           + b1[None, :, None, None])

    pooled = out.mean(axis=(2, 3))                          # (N, P)
    s = jnp.maximum(jnp.dot(pooled, wse1.T, precision=hp), 0.0)
    s = jax.nn.sigmoid(jnp.dot(s, wse2.T, precision=hp))
    out = out * s[:, :, None, None]
    out = jnp.maximum(out, 0.0)

    out = lax.conv_general_dilated(out, w2, (1, 1), ((1, 1), (1, 1)),
                                   dimension_numbers=dn, precision=hp)
    out = ((out - rm2[None, :, None, None])
           * (g2 / jnp.sqrt(rv2 + eps))[None, :, None, None]
           + b2[None, :, None, None])
    return jnp.maximum(out + x, 0.0)


if __name__ == "__main__":
    # SEBasicBlock(inplanes=8, planes=16, cfg=8, stride=1, downsample=None,
    #              reduction=4) on a 2x8x16x16 input.  W*C = 128 (lane-dense).
    N, C, H, W = 2, 8, 16, 16
    P = 16
    reduction = 4
    Hd = P // reduction
    eps = 1e-5

    key = jax.random.PRNGKey(0)
    ks = jax.random.split(key, 10)

    w1 = jax.random.normal(ks[0], (P, C, 3, 3), jnp.float32) * 0.1    # conv1 OIHW
    g1 = 1.0 + 0.1 * jax.random.normal(ks[1], (P,), jnp.float32)       # bn1 gamma
    b1 = 0.1 * jax.random.normal(ks[2], (P,), jnp.float32)             # bn1 beta
    rm1 = jnp.zeros((P,), jnp.float32)                                 # running mean
    rv1 = jnp.ones((P,), jnp.float32)                                  # running var
    wse1 = jax.random.normal(ks[3], (Hd, P), jnp.float32) * 0.2        # SE fc1 (out,in)
    wse2 = jax.random.normal(ks[4], (P, Hd), jnp.float32) * 0.2        # SE fc2 (out,in)
    w2 = jax.random.normal(ks[5], (C, P, 3, 3), jnp.float32) * 0.1     # conv2 OIHW
    g2 = 1.0 + 0.1 * jax.random.normal(ks[6], (C,), jnp.float32)       # bn2 gamma
    b2 = 0.1 * jax.random.normal(ks[7], (C,), jnp.float32)             # bn2 beta
    rm2 = jnp.zeros((C,), jnp.float32)
    rv2 = jnp.ones((C,), jnp.float32)
    x = jax.random.normal(ks[8], (N, C, H, W), jnp.float32)

    params = (w1, g1, b1, rm1, rv1, wse1, wse2, w2, g2, b2, rm2, rv2, eps)

    out = jax.block_until_ready(se_basic_block_pallas(x, params))
    ref = se_basic_block_reference(x, params)

    # bf16 MXU operands (f32 accumulate) vs pure-f32 reference.
    np.testing.assert_allclose(np.asarray(out), np.asarray(ref),
                               rtol=3e-2, atol=3e-2)
    print("KERNEL_OK")
</pallas_src>

<mosaic_0001>
module attributes {stable_mosaic.version = 11 : i64} {
  func.func @se_basic_block_kernel(%arg0: i32, %arg1: memref<1x18x128xf32, #tpu.memory_space<vmem>>, %arg2: memref<1x16x128xf32, #tpu.memory_space<vmem>>, %arg3: memref<3x128x256xbf16, #tpu.memory_space<vmem>>, %arg4: memref<1x256xf32, #tpu.memory_space<vmem>>, %arg5: memref<256x4xf32, #tpu.memory_space<vmem>>, %arg6: memref<4x256xf32, #tpu.memory_space<vmem>>, %arg7: memref<3x256x128xbf16, #tpu.memory_space<vmem>>, %arg8: memref<1x128xf32, #tpu.memory_space<vmem>>, %arg9: memref<1x16x128xf32, #tpu.memory_space<vmem>>, %arg10: memref<18x256xf32, #tpu.memory_space<vmem>>) attributes {dimension_semantics = [#tpu.dimension_semantics<parallel>], iteration_bounds = array<i64: 2>, scalar_prefetch = 0 : i64, scratch_operands = 1 : i64, tpu.core_type = #tpu.core_type<tc>, window_params = [{transform_indices = @transform_0, window_bounds = array<i64: 1, 18, 128>}, {transform_indices = @transform_1, window_bounds = array<i64: 1, 16, 128>}, {pipeline_mode = #tpu.pipeline_mode<synchronous>, transform_indices = @transform_2, window_bounds = array<i64: 3, 128, 256>}, {pipeline_mode = #tpu.pipeline_mode<synchronous>, transform_indices = @transform_3, window_bounds = array<i64: 1, 256>}, {pipeline_mode = #tpu.pipeline_mode<synchronous>, transform_indices = @transform_4, window_bounds = array<i64: 256, 4>}, {pipeline_mode = #tpu.pipeline_mode<synchronous>, transform_indices = @transform_5, window_bounds = array<i64: 4, 256>}, {pipeline_mode = #tpu.pipeline_mode<synchronous>, transform_indices = @transform_6, window_bounds = array<i64: 3, 256, 128>}, {pipeline_mode = #tpu.pipeline_mode<synchronous>, transform_indices = @transform_7, window_bounds = array<i64: 1, 128>}, {transform_indices = @transform_8, window_bounds = array<i64: 1, 16, 128>}]} {
    %c0 = arith.constant 0 : index
    %c0_0 = arith.constant 0 : index
    %c0_1 = arith.constant 0 : index
    %0 = vector.load %arg1[%c0, %c0_0, %c0_1] : memref<1x18x128xf32, #tpu.memory_space<vmem>>, vector<1x16x128xf32>
    %1 = vector.shape_cast %0 : vector<1x16x128xf32> to vector<16x128xf32>
    %2 = arith.truncf %1 : vector<16x128xf32> to vector<16x128xbf16>
    %c0_2 = arith.constant 0 : index
    %c0_3 = arith.constant 0 : index
    %c0_4 = arith.constant 0 : index
    %3 = vector.load %arg3[%c0_2, %c0_3, %c0_4] : memref<3x128x256xbf16, #tpu.memory_space<vmem>>, vector<1x128x256xbf16>
    %4 = vector.shape_cast %3 : vector<1x128x256xbf16> to vector<128x256xbf16>
    %cst = arith.constant dense<0.000000e+00> : vector<16x256xf32>
    %5 = tpu.matmul %2, %4, %cst {dimension_numbers = #tpu.dot_dimension_numbers<[1], [0], [0], [1], [0, 0, 1, 1], [], []>} : vector<16x128xbf16>, vector<128x256xbf16>, vector<16x256xf32> -> vector<16x256xf32>
    %c0_5 = arith.constant 0 : index
    %c1 = arith.constant 1 : index
    %c0_6 = arith.constant 0 : index
    %6 = vector.load %arg1[%c0_5, %c1, %c0_6] : memref<1x18x128xf32, #tpu.memory_space<vmem>>, vector<1x16x128xf32>
    %7 = vector.shape_cast %6 : vector<1x16x128xf32> to vector<16x128xf32>
    %8 = arith.truncf %7 : vector<16x128xf32> to vector<16x128xbf16>
    %c1_7 = arith.constant 1 : index
    %c0_8 = arith.constant 0 : index
    %c0_9 = arith.constant 0 : index
    %9 = vector.load %arg3[%c1_7, %c0_8, %c0_9] : memref<3x128x256xbf16, #tpu.memory_space<vmem>>, vector<1x128x256xbf16>
    %10 = vector.shape_cast %9 : vector<1x128x256xbf16> to vector<128x256xbf16>
    %cst_10 = arith.constant dense<0.000000e+00> : vector<16x256xf32>
    %11 = tpu.matmul %8, %10, %cst_10 {dimension_numbers = #tpu.dot_dimension_numbers<[1], [0], [0], [1], [0, 0, 1, 1], [], []>} : vector<16x128xbf16>, vector<128x256xbf16>, vector<16x256xf32> -> vector<16x256xf32>
    %12 = arith.addf %5, %11 : vector<16x256xf32>
    %c0_11 = arith.constant 0 : index
    %c2 = arith.constant 2 : index
    %c0_12 = arith.constant 0 : index
    %13 = vector.load %arg1[%c0_11, %c2, %c0_12] : memref<1x18x128xf32, #tpu.memory_space<vmem>>, vector<1x16x128xf32>
    %14 = vector.shape_cast %13 : vector<1x16x128xf32> to vector<16x128xf32>
    %15 = arith.truncf %14 : vector<16x128xf32> to vector<16x128xbf16>
    %c2_13 = arith.constant 2 : index
    %c0_14 = arith.constant 0 : index
    %c0_15 = arith.constant 0 : index
    %16 = vector.load %arg3[%c2_13, %c0_14, %c0_15] : memref<3x128x256xbf16, #tpu.memory_space<vmem>>, vector<1x128x256xbf16>
    %17 = vector.shape_cast %16 : vector<1x128x256xbf16> to vector<128x256xbf16>
    %cst_16 = arith.constant dense<0.000000e+00> : vector<16x256xf32>
    %18 = tpu.matmul %15, %17, %cst_16 {dimension_numbers = #tpu.dot_dimension_numbers<[1], [0], [0], [1], [0, 0, 1, 1], [], []>} : vector<16x128xbf16>, vector<128x256xbf16>, vector<16x256xf32> -> vector<16x256xf32>
    %19 = arith.addf %12, %18 : vector<16x256xf32>
    %c0_17 = arith.constant 0 : index
    %c0_18 = arith.constant 0 : index
    %20 = vector.load %arg4[%c0_17, %c0_18] : memref<1x256xf32, #tpu.memory_space<vmem>>, vector<1x256xf32>
    %21 = vector.broadcast %20 : vector<1x256xf32> to vector<16x256xf32>
    %22 = arith.addf %19, %21 : vector<16x256xf32>
    %cst_19 = arith.constant dense<0.000000e+00> : vector<256xf32>
    %23 = vector.multi_reduction <add>, %22, %cst_19 [0] : vector<16x256xf32> to vector<256xf32>
    %24 = vector.shape_cast %23 : vector<256xf32> to vector<1x256xf32>
    %cst_20 = arith.constant 1.600000e+01 : f32
    %25 = vector.broadcast %cst_20 : f32 to vector<1x256xf32>
    %26 = arith.divf %24, %25 : vector<1x256xf32>
    %c0_21 = arith.constant 0 : index
    %c0_22 = arith.constant 0 : index
    %27 = vector.load %arg5[%c0_21, %c0_22] : memref<256x4xf32, #tpu.memory_space<vmem>>, vector<256x4xf32>
    %cst_23 = arith.constant dense<0.000000e+00> : vector<1x4xf32>
    %28 = tpu.matmul %26, %27, %cst_23 {dimension_numbers = #tpu.dot_dimension_numbers<[1], [0], [0], [1], [0, 0, 1, 1], [], []>} : vector<1x256xf32>, vector<256x4xf32>, vector<1x4xf32> -> vector<1x4xf32>
    %cst_24 = arith.constant 0.000000e+00 : f32
    %29 = vector.broadcast %cst_24 : f32 to vector<1x4xf32>
    %30 = arith.maximumf %28, %29 : vector<1x4xf32>
    %c0_25 = arith.constant 0 : index
    %c0_26 = arith.constant 0 : index
    %31 = vector.load %arg6[%c0_25, %c0_26] : memref<4x256xf32, #tpu.memory_space<vmem>>, vector<4x256xf32>
    %cst_27 = arith.constant dense<0.000000e+00> : vector<1x256xf32>
    %32 = tpu.matmul %30, %31, %cst_27 {dimension_numbers = #tpu.dot_dimension_numbers<[1], [0], [0], [1], [0, 0, 1, 1], [], []>} : vector<1x4xf32>, vector<4x256xf32>, vector<1x256xf32> -> vector<1x256xf32>
    %33 = arith.negf %32 : vector<1x256xf32>
    %34 = math.exp %33 : vector<1x256xf32>
    %cst_28 = arith.constant 1.000000e+00 : f32
    %35 = vector.broadcast %cst_28 : f32 to vector<1x256xf32>
    %36 = arith.addf %35, %34 : vector<1x256xf32>
    %37 = arith.divf %35, %36 : vector<1x256xf32>
    %38 = vector.broadcast %37 : vector<1x256xf32> to vector<16x256xf32>
    %39 = arith.mulf %22, %38 : vector<16x256xf32>
    %cst_29 = arith.constant 0.000000e+00 : f32
    %40 = vector.broadcast %cst_29 : f32 to vector<16x256xf32>
    %41 = arith.maximumf %39, %40 : vector<16x256xf32>
    %cst_30 = arith.constant 0.000000e+00 : f32
    %42 = vector.broadcast %cst_30 : f32 to vector<1x256xf32>
    %c0_31 = arith.constant 0 : index
    %c0_32 = arith.constant 0 : index
    %43 = vector.load %arg10[%c0_31, %c0_32] : memref<18x256xf32, #tpu.memory_space<vmem>>, vector<1x256xf32>
    tpu.vector_store %arg10[%c0_31, %c0_32], %42 {strides = array<i32>} : memref<18x256xf32, #tpu.memory_space<vmem>>, vector<1x256xf32>,
    %cst_33 = arith.constant 0.000000e+00 : f32
    %44 = vector.broadcast %cst_33 : f32 to vector<1x256xf32>
    %c17 = arith.constant 17 : index
    %c0_34 = arith.constant 0 : index
    %45 = vector.load %arg10[%c17, %c0_34] : memref<18x256xf32, #tpu.memory_space<vmem>>, vector<1x256xf32>
    tpu.vector_store %arg10[%c17, %c0_34], %44 {strides = array<i32>} : memref<18x256xf32, #tpu.memory_space<vmem>>, vector<1x256xf32>,
    %c1_35 = arith.constant 1 : index
    %c0_36 = arith.constant 0 : index
    %46 = vector.load %arg10[%c1_35, %c0_36] : memref<18x256xf32, #tpu.memory_space<vmem>>, vector<16x256xf32>
    tpu.vector_store %arg10[%c1_35, %c0_36], %41 {strides = array<i32>} : memref<18x256xf32, #tpu.memory_space<vmem>>, vector<16x256xf32>,
    %47 = arith.truncf %41 : vector<16x256xf32> to vector<16x256xbf16>
    %c1_37 = arith.constant 1 : index
    %c0_38 = arith.constant 0 : index
    %c0_39 = arith.constant 0 : index
    %48 = vector.load %arg7[%c1_37, %c0_38, %c0_39] : memref<3x256x128xbf16, #tpu.memory_space<vmem>>, vector<1x256x128xbf16>
    %49 = vector.shape_cast %48 : vector<1x256x128xbf16> to vector<256x128xbf16>
    %cst_40 = arith.constant dense<0.000000e+00> : vector<16x128xf32>
    %50 = tpu.matmul %47, %49, %cst_40 {dimension_numbers = #tpu.dot_dimension_numbers<[1], [0], [0], [1], [0, 0, 1, 1], [], []>} : vector<16x256xbf16>, vector<256x128xbf16>, vector<16x128xf32> -> vector<16x128xf32>
    %c0_41 = arith.constant 0 : index
    %c0_42 = arith.constant 0 : index
    %51 = vector.load %arg10[%c0_41, %c0_42] : memref<18x256xf32, #tpu.memory_space<vmem>>, vector<16x256xf32>
    %52 = arith.truncf %51 : vector<16x256xf32> to vector<16x256xbf16>
    %c0_43 = arith.constant 0 : index
    %c0_44 = arith.constant 0 : index
    %c0_45 = arith.constant 0 : index
    %53 = vector.load %arg7[%c0_43, %c0_44, %c0_45] : memref<3x256x128xbf16, #tpu.memory_space<vmem>>, vector<1x256x128xbf16>
    %54 = vector.shape_cast %53 : vector<1x256x128xbf16> to vector<256x128xbf16>
    %cst_46 = arith.constant dense<0.000000e+00> : vector<16x128xf32>
    %55 = tpu.matmul %52, %54, %cst_46 {dimension_numbers = #tpu.dot_dimension_numbers<[1], [0], [0], [1], [0, 0, 1, 1], [], []>} : vector<16x256xbf16>, vector<256x128xbf16>, vector<16x128xf32> -> vector<16x128xf32>
    %56 = arith.addf %50, %55 : vector<16x128xf32>
    %c2_47 = arith.constant 2 : index
    %c0_48 = arith.constant 0 : index
    %57 = vector.load %arg10[%c2_47, %c0_48] : memref<18x256xf32, #tpu.memory_space<vmem>>, vector<16x256xf32>
    %58 = arith.truncf %57 : vector<16x256xf32> to vector<16x256xbf16>
    %c2_49 = arith.constant 2 : index
    %c0_50 = arith.constant 0 : index
    %c0_51 = arith.constant 0 : index
    %59 = vector.load %arg7[%c2_49, %c0_50, %c0_51] : memref<3x256x128xbf16, #tpu.memory_space<vmem>>, vector<1x256x128xbf16>
    %60 = vector.shape_cast %59 : vector<1x256x128xbf16> to vector<256x128xbf16>
    %cst_52 = arith.constant dense<0.000000e+00> : vector<16x128xf32>
    %61 = tpu.matmul %58, %60, %cst_52 {dimension_numbers = #tpu.dot_dimension_numbers<[1], [0], [0], [1], [0, 0, 1, 1], [], []>} : vector<16x256xbf16>, vector<256x128xbf16>, vector<16x128xf32> -> vector<16x128xf32>
    %62 = arith.addf %56, %61 : vector<16x128xf32>
    %c0_53 = arith.constant 0 : index
    %c0_54 = arith.constant 0 : index
    %63 = vector.load %arg8[%c0_53, %c0_54] : memref<1x128xf32, #tpu.memory_space<vmem>>, vector<1x128xf32>
    %64 = vector.broadcast %63 : vector<1x128xf32> to vector<16x128xf32>
    %65 = arith.addf %62, %64 : vector<16x128xf32>
    %c0_55 = arith.constant 0 : index
    %c0_56 = arith.constant 0 : index
    %c0_57 = arith.constant 0 : index
    %66 = vector.load %arg2[%c0_55, %c0_56, %c0_57] : memref<1x16x128xf32, #tpu.memory_space<vmem>>, vector<1x16x128xf32>
    %67 = vector.shape_cast %66 : vector<1x16x128xf32> to vector<16x128xf32>
    %68 = arith.addf %65, %67 : vector<16x128xf32>
    %cst_58 = arith.constant 0.000000e+00 : f32
    %69 = vector.broadcast %cst_58 : f32 to vector<16x128xf32>
    %70 = arith.maximumf %68, %69 : vector<16x128xf32>
    %c0_59 = arith.constant 0 : index
    %c0_60 = arith.constant 0 : index
    %c0_61 = arith.constant 0 : index
    %71 = vector.load %arg9[%c0_59, %c0_60, %c0_61] : memref<1x16x128xf32, #tpu.memory_space<vmem>>, vector<1x16x128xf32>
    %72 = vector.shape_cast %71 : vector<1x16x128xf32> to vector<16x128xf32>
    %73 = vector.shape_cast %70 : vector<16x128xf32> to vector<1x16x128xf32>
    tpu.vector_store %arg9[%c0_59, %c0_60, %c0_61], %73 {strides = array<i32>} : memref<1x16x128xf32, #tpu.memory_space<vmem>>, vector<1x16x128xf32>,
    return
  }
  func.func @transform_0(%arg0: i32) -> (i32, i32, i32) {
    %c0_i32 = arith.constant 0 : i32
    %c0_i32_0 = arith.constant 0 : i32
    %c0_i32_1 = arith.constant 0 : i32
    return %arg0, %c0_i32, %c0_i32_0 : i32, i32, i32
  }
  func.func @transform_1(%arg0: i32) -> (i32, i32, i32) {
    %c0_i32 = arith.constant 0 : i32
    %c0_i32_0 = arith.constant 0 : i32
    %c0_i32_1 = arith.constant 0 : i32
    return %arg0, %c0_i32, %c0_i32_0 : i32, i32, i32
  }
  func.func @transform_2(%arg0: i32) -> (i32, i32, i32) {
    %c0_i32 = arith.constant 0 : i32
    %c0_i32_0 = arith.constant 0 : i32
    %c0_i32_1 = arith.constant 0 : i32
    %c0_i32_2 = arith.constant 0 : i32
    return %c0_i32, %c0_i32_0, %c0_i32_1 : i32, i32, i32
  }
  func.func @transform_3(%arg0: i32) -> (i32, i32) {
    %c0_i32 = arith.constant 0 : i32
    %c0_i32_0 = arith.constant 0 : i32
    %c0_i32_1 = arith.constant 0 : i32
    return %c0_i32, %c0_i32_0 : i32, i32
  }
  func.func @transform_4(%arg0: i32) -> (i32, i32) {
    %c0_i32 = arith.constant 0 : i32
    %c0_i32_0 = arith.constant 0 : i32
    %c0_i32_1 = arith.constant 0 : i32
    return %c0_i32, %c0_i32_0 : i32, i32
  }
  func.func @transform_5(%arg0: i32) -> (i32, i32) {
    %c0_i32 = arith.constant 0 : i32
    %c0_i32_0 = arith.constant 0 : i32
    %c0_i32_1 = arith.constant 0 : i32
    return %c0_i32, %c0_i32_0 : i32, i32
  }
  func.func @transform_6(%arg0: i32) -> (i32, i32, i32) {
    %c0_i32 = arith.constant 0 : i32
    %c0_i32_0 = arith.constant 0 : i32
    %c0_i32_1 = arith.constant 0 : i32
    %c0_i32_2 = arith.constant 0 : i32
    return %c0_i32, %c0_i32_0, %c0_i32_1 : i32, i32, i32
  }
  func.func @transform_7(%arg0: i32) -> (i32, i32) {
    %c0_i32 = arith.constant 0 : i32
    %c0_i32_0 = arith.constant 0 : i32
    %c0_i32_1 = arith.constant 0 : i32
    return %c0_i32, %c0_i32_0 : i32, i32
  }
  func.func @transform_8(%arg0: i32) -> (i32, i32, i32) {
    %c0_i32 = arith.constant 0 : i32
    %c0_i32_0 = arith.constant 0 : i32
    %c0_i32_1 = arith.constant 0 : i32
    return %arg0, %c0_i32, %c0_i32_0 : i32, i32, i32
  }
}

</mosaic_0001>

<llo_original>
// kernel: tpu_custom_call.1
$region0: #{tpu_custom_call.1}
  #allocation0 [shape = 'u32[]', space=smem, size = 0x4, offset = 0x4, fixed_abs, tag = 'smem constant byte address 0x4 - core index']
  #allocation1 [shape = 'u32[144,128]{1,0:T(1,128)}', space=vmem, size = 0x12000, scoped, tag = 'internal scratch']
  #allocation2 [shape = 'f32[18,256]{1,0:T(8,128)}', space=vmem, size = 0x6000, scoped, tag = 'scratch operand']
  %s0 = inlined_call_operand.vmem [shape: f32[2,18,128], index: 0, kind: input, shape index: {}]
  %s1 = inlined_call_operand.vmem [shape: f32[2,16,128], index: 1, kind: input, shape index: {}]
  %s2 = inlined_call_operand.hbm [shape: bf16[3,128,256], index: 2, kind: input, shape index: {}]
  %s3 = inlined_call_operand.vmem [shape: f32[1,256], index: 3, kind: input, shape index: {}]
  %s4 = inlined_call_operand.vmem [shape: f32[256,4], index: 4, kind: input, shape index: {}]
  %s5 = inlined_call_operand.vmem [shape: f32[4,256], index: 5, kind: input, shape index: {}]
  %s6 = inlined_call_operand.hbm [shape: bf16[3,256,128], index: 6, kind: input, shape index: {}]
  %s7 = inlined_call_operand.vmem [shape: f32[1,128], index: 7, kind: input, shape index: {}]
  %s8 = inlined_call_operand.hbm [shape: f32[2,16,128], index: 8, kind: output, shape index: {}]
  %s9 = sld [smem:[#allocation0]]
  $region73: #{tpu_custom_call.1} parent=0
    _
  %s11 = ssub.s32 1, %s9
  %s12 = scalar_select 0, %s11, %s9
  $region1: #{tpu_custom_call.1} parent=0
    #allocation3 [shape = 'u8[196608]{0}', space=vmem, size = 0x30000, scoped, tag = 'input window, operand 2, single buffered']
    #allocation4 [shape = 's32[2]{0}', space=sflag, size = 0x8, scoped, tag = 'scoped memory for tpu_custom_call.1']
    #allocation5 [shape = 's32[2]{0}', space=sflag, size = 0x8, scoped, tag = 'scoped memory for tpu_custom_call.1']
    #allocation6 [shape = 'u8[196608]{0}', space=vmem, size = 0x30000, scoped, tag = 'input window, operand 6, single buffered']
    #allocation7 [shape = 's32[1]{0}', space=sflag, size = 0x4, scoped, tag = 'scoped memory for tpu_custom_call.1']
    #allocation8 [shape = 'u8[16384]{0}', space=vmem, size = 0x4000, scoped, tag = 'output window, operand 0']
    %13 = vsyncpa [#allocation4], 0
    %14 = vsyncpa [#allocation7], 0
    %15 = vsyncpa [#allocation5], 0
    %s16 = scalar_lea.sflag [#allocation5], 1
    %17 = vsyncpa %s16, 0
    loop: start=0, step=1, limit=4
    $region2: #{tpu_custom_call.1} parent=1 // loop_pre_header
      _
    $region3: #{tpu_custom_call.1} parent=1 // loop_header
      %s19 = sphi 0, %s23
      %p20 = scmp.ge.s32.totalorder %s19, 4
      %s29 = sphi 0, %s31
      %s32 = sphi 0, %s29
      %s33 = sphi 0, %s32
      %s49 = sphi 0, %s33
      %s55 = sphi 0, %s57
      %s58 = sphi 0, %s55
      %s59 = sphi 0, %s58
      %s75 = sphi 0, %s59
      %s79 = sphi 0, %s79
      %s81 = sphi 0, %s79
      %s82 = sphi 0, %s81
      %s96 = sphi 0, %s82
      %s100 = sphi 0, %s100
      %s102 = sphi 0, %s100
      %s103 = sphi 0, %s102
      %s117 = sphi 0, %s103
      %s121 = sphi 0, %s121
      %s123 = sphi 0, %s121
      %s124 = sphi 0, %s123
      %s138 = sphi 0, %s124
      %s142 = sphi 0, %s142
      %s144 = sphi 0, %s142
      %s145 = sphi 0, %s144
      %s159 = sphi 0, %s145
      %s163 = sphi 0, %s163
      %s165 = sphi 0, %s163
      %s166 = sphi 0, %s165
      %s180 = sphi 0, %s166
      %s184 = sphi 0, %s184
      %s186 = sphi 0, %s184
      %s187 = sphi 0, %s186
      %s201 = sphi 0, %s187
      %s207 = sphi 0, %s209
      %s210 = sphi 0, %s207
      %s211 = sphi 0, %s210
      %s227 = sphi 0, %s211
    $region4: #{tpu_custom_call.1} parent=1 // loop_header_branch
      %22 = sbr.rel (%p20) target = $region8
    $region5: #{tpu_custom_call.1} parent=1 // loop_body
      %s24 = ssub.s32 %s19, 1
      %s25 = ssub.s32 %s19, 2
      %s26 = sadd.s32 %s19, 1
      %s27 = ssub.s32 %s19, %s26
      %p28 = scmp.eq.s32.totalorder %s27, 0
      %s30 = sadd.s32 %s29, 1
      %s31 = scalar_select %p28, %s29, %s30
      %p34 = pneg %p28
      %p35 = scmp.eq.s32.totalorder %s19, 1
      %p36 = por %p34, %p35
      %p37 = scmp.ne.s32.totalorder %s29, %s32
      %p38 = scmp.eq.s32.totalorder %s19, 0
      %p39 = por %p37, %p38
      %p40 = scmp.ne.s32.totalorder %s29, %s32
      %p41 = scmp.eq.s32.totalorder %s24, 1
      %p42 = por %p40, %p41
      %p43 = scmp.ne.s32.totalorder %s32, %s33
      %p44 = scmp.eq.s32.totalorder %s24, 0
      %p45 = por %p43, %p44
      %p46 = scmp.ne.s32.totalorder %s32, %s33
      %p47 = scmp.eq.s32.totalorder %s25, 1
      %p48 = por %p46, %p47
      %p50 = scmp.ne.s32.totalorder %s33, %s49
      %p51 = scmp.eq.s32.totalorder %s25, 0
      %p52 = por %p50, %p51
      %s53 = ssub.s32 %s19, %s26
      %p54 = scmp.eq.s32.totalorder %s53, 0
      %s56 = sadd.s32 %s55, 1
      %s57 = scalar_select %p54, %s55, %s56
      %p60 = pneg %p54
      %p61 = scmp.eq.s32.totalorder %s19, 1
      %p62 = por %p60, %p61
      %p63 = scmp.ne.s32.totalorder %s55, %s58
      %p64 = scmp.eq.s32.totalorder %s19, 0
      %p65 = por %p63, %p64
      %p66 = scmp.ne.s32.totalorder %s55, %s58
      %p67 = scmp.eq.s32.totalorder %s24, 1
      %p68 = por %p66, %p67
      %p69 = scmp.ne.s32.totalorder %s58, %s59
      %p70 = scmp.eq.s32.totalorder %s24, 0
      %p71 = por %p69, %p70
      %p72 = scmp.ne.s32.totalorder %s58, %s59
      %p73 = scmp.eq.s32.totalorder %s25, 1
      %p74 = por %p72, %p73
      %p76 = scmp.ne.s32.totalorder %s59, %s75
      %p77 = scmp.eq.s32.totalorder %s25, 0
      %p78 = por %p76, %p77
      %s80 = sadd.s32 %s79, 1
      %p83 = scmp.eq.s32.totalorder %s19, 1
      %p84 = scmp.ne.s32.totalorder %s79, %s81
      %p85 = scmp.eq.s32.totalorder %s19, 0
      %p86 = por %p84, %p85
      %p87 = scmp.ne.s32.totalorder %s79, %s81
      %p88 = scmp.eq.s32.totalorder %s24, 1
      %p89 = por %p87, %p88
      %p90 = scmp.ne.s32.totalorder %s81, %s82
      %p91 = scmp.eq.s32.totalorder %s24, 0
      %p92 = por %p90, %p91
      %p93 = scmp.ne.s32.totalorder %s81, %s82
      %p94 = scmp.eq.s32.totalorder %s25, 1
      %p95 = por %p93, %p94
      %p97 = scmp.ne.s32.totalorder %s82, %s96
      %p98 = scmp.eq.s32.totalorder %s25, 0
      %p99 = por %p97, %p98
      %s101 = sadd.s32 %s100, 1
      %p104 = scmp.eq.s32.totalorder %s19, 1
      %p105 = scmp.ne.s32.totalorder %s100, %s102
      %p106 = scmp.eq.s32.totalorder %s19, 0
      %p107 = por %p105, %p106
      %p108 = scmp.ne.s32.totalorder %s100, %s102
      %p109 = scmp.eq.s32.totalorder %s24, 1
      %p110 = por %p108, %p109
      %p111 = scmp.ne.s32.totalorder %s102, %s103
      %p112 = scmp.eq.s32.totalorder %s24, 0
      %p113 = por %p111, %p112
      %p114 = scmp.ne.s32.totalorder %s102, %s103
      %p115 = scmp.eq.s32.totalorder %s25, 1
      %p116 = por %p114, %p115
      %p118 = scmp.ne.s32.totalorder %s103, %s117
      %p119 = scmp.eq.s32.totalorder %s25, 0
      %p120 = por %p118, %p119
      %s122 = sadd.s32 %s121, 1
      %p125 = scmp.eq.s32.totalorder %s19, 1
      %p126 = scmp.ne.s32.totalorder %s121, %s123
      %p127 = scmp.eq.s32.totalorder %s19, 0
      %p128 = por %p126, %p127
      %p129 = scmp.ne.s32.totalorder %s121, %s123
      %p130 = scmp.eq.s32.totalorder %s24, 1
      %p131 = por %p129, %p130
      %p132 = scmp.ne.s32.totalorder %s123, %s124
      %p133 = scmp.eq.s32.totalorder %s24, 0
      %p134 = por %p132, %p133
      %p135 = scmp.ne.s32.totalorder %s123, %s124
      %p136 = scmp.eq.s32.totalorder %s25, 1
      %p137 = por %p135, %p136
      %p139 = scmp.ne.s32.totalorder %s124, %s138
      %p140 = scmp.eq.s32.totalorder %s25, 0
      %p141 = por %p139, %p140
      %s143 = sadd.s32 %s142, 1
      %p146 = scmp.eq.s32.totalorder %s19, 1
      %p147 = scmp.ne.s32.totalorder %s142, %s144
      %p148 = scmp.eq.s32.totalorder %s19, 0
      %p149 = por %p147, %p148
      %p150 = scmp.ne.s32.totalorder %s142, %s144
      %p151 = scmp.eq.s32.totalorder %s24, 1
      %p152 = por %p150, %p151
      %p153 = scmp.ne.s32.totalorder %s144, %s145
      %p154 = scmp.eq.s32.totalorder %s24, 0
      %p155 = por %p153, %p154
      %p156 = scmp.ne.s32.totalorder %s144, %s145
      %p157 = scmp.eq.s32.totalorder %s25, 1
      %p158 = por %p156, %p157
      %p160 = scmp.ne.s32.totalorder %s145, %s159
      %p161 = scmp.eq.s32.totalorder %s25, 0
      %p162 = por %p160, %p161
      %s164 = sadd.s32 %s163, 1
      %p167 = scmp.eq.s32.totalorder %s19, 1
      %p168 = scmp.ne.s32.totalorder %s163, %s165
      %p169 = scmp.eq.s32.totalorder %s19, 0
      %p170 = por %p168, %p169
      %p171 = scmp.ne.s32.totalorder %s163, %s165
      %p172 = scmp.eq.s32.totalorder %s24, 1
      %p173 = por %p171, %p172
      %p174 = scmp.ne.s32.totalorder %s165, %s166
      %p175 = scmp.eq.s32.totalorder %s24, 0
      %p176 = por %p174, %p175
      %p177 = scmp.ne.s32.totalorder %s165, %s166
      %p178 = scmp.eq.s32.totalorder %s25, 1
      %p179 = por %p177, %p178
      %p181 = scmp.ne.s32.totalorder %s166, %s180
      %p182 = scmp.eq.s32.totalorder %s25, 0
      %p183 = por %p181, %p182
      %s185 = sadd.s32 %s184, 1
      %p188 = scmp.eq.s32.totalorder %s19, 1
      %p189 = scmp.ne.s32.totalorder %s184, %s186
      %p190 = scmp.eq.s32.totalorder %s19, 0
      %p191 = por %p189, %p190
      %p192 = scmp.ne.s32.totalorder %s184, %s186
      %p193 = scmp.eq.s32.totalorder %s24, 1
      %p194 = por %p192, %p193
      %p195 = scmp.ne.s32.totalorder %s186, %s187
      %p196 = scmp.eq.s32.totalorder %s24, 0
      %p197 = por %p195, %p196
      %p198 = scmp.ne.s32.totalorder %s186, %s187
      %p199 = scmp.eq.s32.totalorder %s25, 1
      %p200 = por %p198, %p199
      %p202 = scmp.ne.s32.totalorder %s187, %s201
      %p203 = scmp.eq.s32.totalorder %s25, 0
      %p204 = por %p202, %p203
      %s205 = ssub.s32 %s19, %s26
      %p206 = scmp.eq.s32.totalorder %s205, 0
      %s208 = sadd.s32 %s207, 1
      %s209 = scalar_select %p206, %s207, %s208
      %p212 = pneg %p206
      %p213 = scmp.eq.s32.totalorder %s19, 1
      %p214 = por %p212, %p213
      %p215 = scmp.ne.s32.totalorder %s207, %s210
      %p216 = scmp.eq.s32.totalorder %s19, 0
      %p217 = por %p215, %p216
      %p218 = scmp.ne.s32.totalorder %s207, %s210
      %p219 = scmp.eq.s32.totalorder %s24, 1
      %p220 = por %p218, %p219
      %p221 = scmp.ne.s32.totalorder %s210, %s211
      %p222 = scmp.eq.s32.totalorder %s24, 0
      %p223 = por %p221, %p222
      %p224 = scmp.ne.s32.totalorder %s210, %s211
      %p225 = scmp.eq.s32.totalorder %s25, 1
      %p226 = por %p224, %p225
      %p228 = scmp.ne.s32.totalorder %s211, %s227
      %p229 = scmp.eq.s32.totalorder %s25, 0
      %p230 = por %p228, %p229
      %p231 = scmp.le.s32.totalorder 1, %s19
      %p232 = scmp.lt.s32.totalorder %s19, 3
      %p233 = pnand %p231, %p232
      %p234 = pneg %p233
      // Predicated region
      $region9: #{tpu_custom_call.1} parent=5 // pred_check
        _
      $region10: #{tpu_custom_call.1} parent=5 // pred_check_branch
        %236 = sbr.rel (%p233) target = $region12
      $region11: #{tpu_custom_call.1} parent=5 // pred_region
        %s237 = ssub.s32 %s19, 1
        // Predicated region
        $region13: #{tpu_custom_call.1} parent=11 // pred_check
          %p238 = pneg %p92
        $region14: #{tpu_custom_call.1} parent=11 // pred_check_branch
          %240 = sbr.rel (%p238) target = $region16
        $region15: #{tpu_custom_call.1} parent=11 // pred_region
          %s242 = ssub.s32 6144, 6144
          %243 = vsyncadd [#allocation4], %s242
          %s244 = sshll.u32 [#allocation3], 4
          %s245 = int_to_ptr.vmem [resolvable:$true] %s244
          %250 = dma.hbm_to_vmem [thread:$0]  %s2, 6144, %s245, [#allocation4], 128, 128, 8
        $region16: #{tpu_custom_call.1} parent=11 // pred_fallthru
          _
        // Predicated region
        $region17: #{tpu_custom_call.1} parent=11 // pred_check
          %p251 = pneg %p113
        $region18: #{tpu_custom_call.1} parent=11 // pred_check_branch
          %253 = sbr.rel (%p251) target = $region20
        $region19: #{tpu_custom_call.1} parent=11 // pred_region
          _
        $region20: #{tpu_custom_call.1} parent=11 // pred_fallthru
          _
        // Predicated region
        $region21: #{tpu_custom_call.1} parent=11 // pred_check
          %p254 = pneg %p134
        $region22: #{tpu_custom_call.1} parent=11 // pred_check_branch
          %256 = sbr.rel (%p254) target = $region24
        $region23: #{tpu_custom_call.1} parent=11 // pred_region
          _
        $region24: #{tpu_custom_call.1} parent=11 // pred_fallthru
          _
        // Predicated region
        $region25: #{tpu_custom_call.1} parent=11 // pred_check
          %p257 = pneg %p155
        $region26: #{tpu_custom_call.1} parent=11 // pred_check_branch
          %259 = sbr.rel (%p257) target = $region28
        $region27: #{tpu_custom_call.1} parent=11 // pred_region
          _
        $region28: #{tpu_custom_call.1} parent=11 // pred_fallthru
          _
        // Predicated region
        $region29: #{tpu_custom_call.1} parent=11 // pred_check
          %p260 = pneg %p176
        $region30: #{tpu_custom_call.1} parent=11 // pred_check_branch
          %262 = sbr.rel (%p260) target = $region32
        $region31: #{tpu_custom_call.1} parent=11 // pred_region
          %s264 = ssub.s32 6144, 6144
          %265 = vsyncadd [#allocation7], %s264
          %s266 = sshll.u32 [#allocation6], 4
          %s267 = int_to_ptr.vmem [resolvable:$true] %s266
          %272 = dma.hbm_to_vmem [thread:$0]  %s6, 6144, %s267, [#allocation7], 64, 64, 4
        $region32: #{tpu_custom_call.1} parent=11 // pred_fallthru
          _
        // Predicated region
        $region33: #{tpu_custom_call.1} parent=11 // pred_check
          %p273 = pneg %p197
        $region34: #{tpu_custom_call.1} parent=11 // pred_check_branch
          %275 = sbr.rel (%p273) target = $region36
        $region35: #{tpu_custom_call.1} parent=11 // pred_region
          _
        $region36: #{tpu_custom_call.1} parent=11 // pred_fallthru
          _
      $region12: #{tpu_custom_call.1} parent=5 // pred_fallthru
        _
      %p276 = scmp.lt.s32.totalorder %s19, 2
      // Predicated region
      $region37: #{tpu_custom_call.1} parent=5 // pred_check
        %p277 = pneg %p276
      $region38: #{tpu_custom_call.1} parent=5 // pred_check_branch
        %279 = sbr.rel (%p277) target = $region40
      $region39: #{tpu_custom_call.1} parent=5 // pred_region
        // Predicated region
        $region41: #{tpu_custom_call.1} parent=39 // pred_check
          %p280 = pneg %p39
        $region42: #{tpu_custom_call.1} parent=39 // pred_check_branch
          %282 = sbr.rel (%p280) target = $region44
        $region43: #{tpu_custom_call.1} parent=39 // pred_region
          %p283 = scmp.lt.s32.totalorder %s19, 1
          %s284 = scalar_select %p283, %s19, 1
          %s285 = smul.addr %s284, 3
          %s286 = smul.addr %s285, 8
          %s287 = scalar_lea.vmem %s0, %s286
        $region44: #{tpu_custom_call.1} parent=39 // pred_fallthru
          _
        // Predicated region
        $region45: #{tpu_custom_call.1} parent=39 // pred_check
          %p288 = pneg %p65
        $region46: #{tpu_custom_call.1} parent=39 // pred_check_branch
          %290 = sbr.rel (%p288) target = $region48
        $region47: #{tpu_custom_call.1} parent=39 // pred_region
          %p291 = scmp.lt.s32.totalorder %s19, 1
          %s292 = scalar_select %p291, %s19, 1
          %s293 = smul.addr %s292, 2
          %s294 = smul.addr %s293, 8
          %s295 = scalar_lea.vmem %s1, %s294
        $region48: #{tpu_custom_call.1} parent=39 // pred_fallthru
          _
      $region40: #{tpu_custom_call.1} parent=5 // pred_fallthru
        _
      %p296 = scmp.le.s32.totalorder 1, %s19
      %p297 = scmp.lt.s32.totalorder %s19, 3
      %p298 = pnand %p296, %p297
      %p299 = pneg %p298
      // Predicated region
      $region49: #{tpu_custom_call.1} parent=5 // pred_check
        _
      $region50: #{tpu_custom_call.1} parent=5 // pred_check_branch
        %301 = sbr.rel (%p298) target = $region52
      $region51: #{tpu_custom_call.1} parent=5 // pred_region
        %s302 = ssub.s32 %s19, 1
        // Predicated region
        $region53: #{tpu_custom_call.1} parent=51 // pred_check
          %p303 = pneg %p92
        $region54: #{tpu_custom_call.1} parent=51 // pred_check_branch
          %305 = sbr.rel (%p303) target = $region56
        $region55: #{tpu_custom_call.1} parent=51 // pred_region
          %306 = dma.done [#allocation4], 6144
        $region56: #{tpu_custom_call.1} parent=51 // pred_fallthru
          _
        // Predicated region
        $region57: #{tpu_custom_call.1} parent=51 // pred_check
          %p307 = pneg %p176
        $region58: #{tpu_custom_call.1} parent=51 // pred_check_branch
          %309 = sbr.rel (%p307) target = $region60
        $region59: #{tpu_custom_call.1} parent=51 // pred_region
          %310 = dma.done [#allocation7], 6144
        $region60: #{tpu_custom_call.1} parent=51 // pred_fallthru
          _
        %p311 = scmp.lt.s32.totalorder %s24, 1
        %s312 = scalar_select %p311, %s24, 1
        %s313 = smul.addr %s312, 3
        %s314 = smul.addr %s313, 8
        %s315 = scalar_lea.vmem %s0, %s314
        %p316 = pneg %p45
        %p317 = pneg %p42
        %p318 = scmp.lt.s32.totalorder %s24, 1
        %s319 = scalar_select %p318, %s24, 1
        %s320 = smul.addr %s319, 2
        %s321 = smul.addr %s320, 8
        %s322 = scalar_lea.vmem %s1, %s321
        %p323 = pneg %p71
        %p324 = pneg %p68
        %p325 = pneg %p92
        %p326 = pneg %p89
        %p327 = pneg %p113
        %p328 = pneg %p110
        %p329 = pneg %p134
        %p330 = pneg %p131
        %p331 = pneg %p155
        %p332 = pneg %p152
        %p333 = pneg %p176
        %p334 = pneg %p173
        %p335 = pneg %p197
        %p336 = pneg %p194
        %p337 = pneg %p223
        %p338 = pneg %p220
        %s339 = sand.u32 %s210, 1
        %s340 = scalar_lea.sflag [#allocation5], %s339
        %s341 = sand.u32 %s210, 1
        %s342 = smul.addr %s341, 16
        %s343 = scalar_lea.vmem [#allocation8], %s342
        %p344 = scmp.lt.s32.totalorder %s24, 1
        %s345 = scalar_select %p344, %s24, 1
        %s346 = smul.addr %s345, 3
        %s347 = smul.addr %s346, 8
        %s348 = scalar_lea.vmem %s0, %s347
        %p349 = scmp.lt.s32.totalorder %s24, 1
        %s350 = scalar_select %p349, %s24, 1
        %s351 = smul.addr %s350, 2
        %s352 = smul.addr %s351, 8
        %s353 = scalar_lea.vmem %s1, %s352
        %v355 = vld [vmem:[%s348] sm:$0xff]
        %v356 = vld [vmem:[%s348 + $0x8] sm:$0xff]
        %v357 = vpack.c.bf16 %v356, %v355
        %v358 = vld [vmem:[#allocation3] sm:$0xff]
        %v359 = vld [vmem:[#allocation3 + $0x8] sm:$0xff]
        %v360 = vld [vmem:[#allocation3 + $0x10] sm:$0xff]
        %v361 = vld [vmem:[#allocation3 + $0x18] sm:$0xff]
        %v362 = vld [vmem:[#allocation3 + $0x20] sm:$0xff]
        %v363 = vld [vmem:[#allocation3 + $0x28] sm:$0xff]
        %v364 = vld [vmem:[#allocation3 + $0x30] sm:$0xff]
        %v365 = vld [vmem:[#allocation3 + $0x38] sm:$0xff]
        %v366 = vld [vmem:[#allocation3 + $0x40] sm:$0xff]
        %v367 = vld [vmem:[#allocation3 + $0x48] sm:$0xff]
        %v368 = vld [vmem:[#allocation3 + $0x50] sm:$0xff]
        %v369 = vld [vmem:[#allocation3 + $0x58] sm:$0xff]
        %v370 = vld [vmem:[#allocation3 + $0x60] sm:$0xff]
        %v371 = vld [vmem:[#allocation3 + $0x68] sm:$0xff]
        %v372 = vld [vmem:[#allocation3 + $0x70] sm:$0xff]
        %v373 = vld [vmem:[#allocation3 + $0x78] sm:$0xff]
        %v374 = vld [vmem:[%s348 + $0x1] sm:$0xff]
        %v375 = vld [vmem:[%s348 + $0x9] sm:$0xff]
        %v376 = vpack.c.bf16 %v375, %v374
        %s377 = scalar_lea.vmem [#allocation3], 128
        %v378 = vld [vmem:[%s377] sm:$0xff]
        %v379 = vld [vmem:[%s377 + $0x8] sm:$0xff]
        %v380 = vld [vmem:[%s377 + $0x10] sm:$0xff]
        %v381 = vld [vmem:[%s377 + $0x18] sm:$0xff]
        %v382 = vld [vmem:[%s377 + $0x20] sm:$0xff]
        %v383 = vld [vmem:[%s377 + $0x28] sm:$0xff]
        %v384 = vld [vmem:[%s377 + $0x30] sm:$0xff]
        %v385 = vld [vmem:[%s377 + $0x38] sm:$0xff]
        %v386 = vld [vmem:[%s377 + $0x40] sm:$0xff]
        %v387 = vld [vmem:[%s377 + $0x48] sm:$0xff]
        %v388 = vld [vmem:[%s377 + $0x50] sm:$0xff]
        %v389 = vld [vmem:[%s377 + $0x58] sm:$0xff]
        %v390 = vld [vmem:[%s377 + $0x60] sm:$0xff]
        %v391 = vld [vmem:[%s377 + $0x68] sm:$0xff]
        %v392 = vld [vmem:[%s377 + $0x70] sm:$0xff]
        %v393 = vld [vmem:[%s377 + $0x78] sm:$0xff]
        %v410 = vunpack.c.l.b16 %v378
        %v411 = vunpack.c.h.b16 %v378
        %v412 = vunpack.c.l.b16 %v379
        %v413 = vunpack.c.h.b16 %v379
        %v414 = vunpack.c.l.b16 %v380
        %v415 = vunpack.c.h.b16 %v380
        %v416 = vunpack.c.l.b16 %v381
        %v417 = vunpack.c.h.b16 %v381
        %v418 = vunpack.c.l.b16 %v382
        %v419 = vunpack.c.h.b16 %v382
        %v420 = vunpack.c.l.b16 %v383
        %v421 = vunpack.c.h.b16 %v383
        %v422 = vunpack.c.l.b16 %v384
        %v423 = vunpack.c.h.b16 %v384
        %v424 = vunpack.c.l.b16 %v385
        %v425 = vunpack.c.h.b16 %v385
        %v426 = vunpack.c.l.b16 %v386
        %v427 = vunpack.c.h.b16 %v386
        %v428 = vunpack.c.l.b16 %v387
        %v429 = vunpack.c.h.b16 %v387
        %v430 = vunpack.c.l.b16 %v388
        %v431 = vunpack.c.h.b16 %v388
        %v432 = vunpack.c.l.b16 %v389
        %v433 = vunpack.c.h.b16 %v389
        %v434 = vunpack.c.l.b16 %v390
        %v435 = vunpack.c.h.b16 %v390
        %v436 = vunpack.c.l.b16 %v391
        %v437 = vunpack.c.h.b16 %v391
        %v438 = vunpack.c.l.b16 %v392
        %v439 = vunpack.c.h.b16 %v392
        %v440 = vunpack.c.l.b16 %v393
        %v441 = vunpack.c.h.b16 %v393
        %v442 = vpack.c.b16 %v412, %v410
        %v443 = vpack.c.b16 %v413, %v411
        %v444 = vpack.c.b16 %v416, %v414
        %v445 = vpack.c.b16 %v417, %v415
        %v446 = vpack.c.b16 %v420, %v418
        %v447 = vpack.c.b16 %v421, %v419
        %v448 = vpack.c.b16 %v424, %v422
        %v449 = vpack.c.b16 %v425, %v423
        %v450 = vpack.c.b16 %v428, %v426
        %v451 = vpack.c.b16 %v429, %v427
        %v452 = vpack.c.b16 %v432, %v430
        %v453 = vpack.c.b16 %v433, %v431
        %v454 = vpack.c.b16 %v436, %v434
        %v455 = vpack.c.b16 %v437, %v435
        %v456 = vpack.c.b16 %v440, %v438
        %v457 = vpack.c.b16 %v441, %v439
        %474 = vmatprep.subr.bf16.mxu0 %v443
        %475 = vmatpush1.bf16.msra.mxu0 %v442
        %476 = vmatprep.subr.bf16.mxu0 %v445
        %477 = vmatpush1.bf16.msra.mxu0 %v444
        %478 = vmatprep.subr.bf16.mxu0 %v447
        %479 = vmatpush1.bf16.msra.mxu0 %v446
        %480 = vmatprep.subr.bf16.mxu0 %v449
        %481 = vmatpush1.bf16.msra.mxu0 %v448
        %482 = vmatprep.subr.bf16.mxu0 %v451
        %483 = vmatpush1.bf16.msra.mxu0 %v450
        %484 = vmatprep.subr.bf16.mxu0 %v453
        %485 = vmatpush1.bf16.msra.mxu0 %v452
        %486 = vmatprep.subr.bf16.mxu0 %v455
        %487 = vmatpush1.bf16.msra.mxu0 %v454
        %488 = vmatprep.subr.bf16.mxu0 %v457
        %489 = vmatpush1.bf16.msra.mxu0 %v456
        %490 = vmatprep.subr.bf16.mxu0 0
        %491 = vmatpush1.bf16.msra.mxu0 0
        %492 = vmatprep.subr.bf16.mxu0 0
        %493 = vmatpush1.bf16.msra.mxu0 0
        %494 = vmatprep.subr.bf16.mxu0 0
        %495 = vmatpush1.bf16.msra.mxu0 0
        %496 = vmatprep.subr.bf16.mxu0 0
        %497 = vmatpush1.bf16.msra.mxu0 0
        %498 = vmatprep.subr.bf16.mxu0 0
        %499 = vmatpush1.bf16.msra.mxu0 0
        %500 = vmatprep.subr.bf16.mxu0 0
        %501 = vmatpush1.bf16.msra.mxu0 0
        %502 = vmatprep.subr.bf16.mxu0 0
        %503 = vmatpush1.bf16.msra.mxu0 0
        %504 = vmatprep.subr.bf16.mxu0 0
        %505 = vmatpush1.bf16.msra.mxu0 0
        %506 = vmatprep.mubr.bf16.mxu0 0
        %507 = vmatmul.mubr.bf16.gmra.mrb[0].mxu0 %v376
        %v508 = vpop.f32.mrb[0].mxu0
        %v509 = vadd.f32 0.0, %v508
        %v510 = vpop.f32.mrb[0].mxu0
        %v511 = vadd.f32 0.0, %v510
        %v512 = vpop.f32.mrb[0].mxu0
        %v513 = vadd.f32 0.0, %v512
        %v514 = vpop.f32.mrb[0].mxu0
        %v515 = vadd.f32 0.0, %v514
        %516 = vdwg.mxu0
        %v533 = vunpack.c.l.b16 %v358
        %v534 = vunpack.c.h.b16 %v358
        %v535 = vunpack.c.l.b16 %v359
        %v536 = vunpack.c.h.b16 %v359
        %v537 = vunpack.c.l.b16 %v360
        %v538 = vunpack.c.h.b16 %v360
        %v539 = vunpack.c.l.b16 %v361
        %v540 = vunpack.c.h.b16 %v361
        %v541 = vunpack.c.l.b16 %v362
        %v542 = vunpack.c.h.b16 %v362
        %v543 = vunpack.c.l.b16 %v363
        %v544 = vunpack.c.h.b16 %v363
        %v545 = vunpack.c.l.b16 %v364
        %v546 = vunpack.c.h.b16 %v364
        %v547 = vunpack.c.l.b16 %v365
        %v548 = vunpack.c.h.b16 %v365
        %v549 = vunpack.c.l.b16 %v366
        %v550 = vunpack.c.h.b16 %v366
        %v551 = vunpack.c.l.b16 %v367
        %v552 = vunpack.c.h.b16 %v367
        %v553 = vunpack.c.l.b16 %v368
        %v554 = vunpack.c.h.b16 %v368
        %v555 = vunpack.c.l.b16 %v369
        %v556 = vunpack.c.h.b16 %v369
        %v557 = vunpack.c.l.b16 %v370
        %v558 = vunpack.c.h.b16 %v370
        %v559 = vunpack.c.l.b16 %v371
        %v560 = vunpack.c.h.b16 %v371
        %v561 = vunpack.c.l.b16 %v372
        %v562 = vunpack.c.h.b16 %v372
        %v563 = vunpack.c.l.b16 %v373
        %v564 = vunpack.c.h.b16 %v373
        %v565 = vpack.c.b16 %v535, %v533
        %v566 = vpack.c.b16 %v536, %v534
        %v567 = vpack.c.b16 %v539, %v537
        %v568 = vpack.c.b16 %v540, %v538
        %v569 = vpack.c.b16 %v543, %v541
        %v570 = vpack.c.b16 %v544, %v542
        %v571 = vpack.c.b16 %v547, %v545
        %v572 = vpack.c.b16 %v548, %v546
        %v573 = vpack.c.b16 %v551, %v549
        %v574 = vpack.c.b16 %v552, %v550
        %v575 = vpack.c.b16 %v555, %v553
        %v576 = vpack.c.b16 %v556, %v554
        %v577 = vpack.c.b16 %v559, %v557
        %v578 = vpack.c.b16 %v560, %v558
        %v579 = vpack.c.b16 %v563, %v561
        %v580 = vpack.c.b16 %v564, %v562
        %597 = vmatprep.subr.bf16.mxu0 %v566
        %598 = vmatpush1.bf16.msra.mxu0 %v565
        %599 = vmatprep.subr.bf16.mxu0 %v568
        %600 = vmatpush1.bf16.msra.mxu0 %v567
        %601 = vmatprep.subr.bf16.mxu0 %v570
        %602 = vmatpush1.bf16.msra.mxu0 %v569
        %603 = vmatprep.subr.bf16.mxu0 %v572
        %604 = vmatpush1.bf16.msra.mxu0 %v571
        %605 = vmatprep.subr.bf16.mxu0 %v574
        %606 = vmatpush1.bf16.msra.mxu0 %v573
        %607 = vmatprep.subr.bf16.mxu0 %v576
        %608 = vmatpush1.bf16.msra.mxu0 %v575
        %609 = vmatprep.subr.bf16.mxu0 %v578
        %610 = vmatpush1.bf16.msra.mxu0 %v577
        %611 = vmatprep.subr.bf16.mxu0 %v580
        %612 = vmatpush1.bf16.msra.mxu0 %v579
        %613 = vmatprep.subr.bf16.mxu0 0
        %614 = vmatpush1.bf16.msra.mxu0 0
        %615 = vmatprep.subr.bf16.mxu0 0
        %616 = vmatpush1.bf16.msra.mxu0 0
        %617 = vmatprep.subr.bf16.mxu0 0
        %618 = vmatpush1.bf16.msra.mxu0 0
        %619 = vmatprep.subr.bf16.mxu0 0
        %620 = vmatpush1.bf16.msra.mxu0 0
        %621 = vmatprep.subr.bf16.mxu0 0
        %622 = vmatpush1.bf16.msra.mxu0 0
        %623 = vmatprep.subr.bf16.mxu0 0
        %624 = vmatpush1.bf16.msra.mxu0 0
        %625 = vmatprep.subr.bf16.mxu0 0
        %626 = vmatpush1.bf16.msra.mxu0 0
        %627 = vmatprep.subr.bf16.mxu0 0
        %628 = vmatpush1.bf16.msra.mxu0 0
        %629 = vmatprep.mubr.bf16.mxu0 0
        %630 = vmatmul.mubr.bf16.gmra.mrb[0].mxu0 %v357
        %v631 = vpop.f32.mrb[0].mxu0
        %v632 = vadd.f32 %v509, %v631
        %v633 = vpop.f32.mrb[0].mxu0
        %v634 = vadd.f32 %v511, %v633
        %v635 = vpop.f32.mrb[0].mxu0
        %v636 = vadd.f32 %v513, %v635
        %v637 = vpop.f32.mrb[0].mxu0
        %v638 = vadd.f32 %v515, %v637
        %639 = vdwg.mxu0
        %v640 = vld [vmem:[%s348 + $0x2] sm:$0xff]
        %v641 = vld [vmem:[%s348 + $0xa] sm:$0xff]
        %v642 = vpack.c.bf16 %v641, %v640
        %s643 = scalar_lea.vmem [#allocation3], 256
        %v644 = vld [vmem:[%s643] sm:$0xff]
        %v645 = vld [vmem:[%s643 + $0x8] sm:$0xff]
        %v646 = vld [vmem:[%s643 + $0x10] sm:$0xff]
        %v647 = vld [vmem:[%s643 + $0x18] sm:$0xff]
        %v648 = vld [vmem:[%s643 + $0x20] sm:$0xff]
        %v649 = vld [vmem:[%s643 + $0x28] sm:$0xff]
        %v650 = vld [vmem:[%s643 + $0x30] sm:$0xff]
        %v651 = vld [vmem:[%s643 + $0x38] sm:$0xff]
        %v652 = vld [vmem:[%s643 + $0x40] sm:$0xff]
        %v653 = vld [vmem:[%s643 + $0x48] sm:$0xff]
        %v654 = vld [vmem:[%s643 + $0x50] sm:$0xff]
        %v655 = vld [vmem:[%s643 + $0x58] sm:$0xff]
        %v656 = vld [vmem:[%s643 + $0x60] sm:$0xff]
        %v657 = vld [vmem:[%s643 + $0x68] sm:$0xff]
        %v658 = vld [vmem:[%s643 + $0x70] sm:$0xff]
        %v659 = vld [vmem:[%s643 + $0x78] sm:$0xff]
        %v676 = vunpack.c.l.b16 %v644
        %v677 = vunpack.c.h.b16 %v644
        %v678 = vunpack.c.l.b16 %v645
        %v679 = vunpack.c.h.b16 %v645
        %v680 = vunpack.c.l.b16 %v646
        %v681 = vunpack.c.h.b16 %v646
        %v682 = vunpack.c.l.b16 %v647
        %v683 = vunpack.c.h.b16 %v647
        %v684 = vunpack.c.l.b16 %v648
        %v685 = vunpack.c.h.b16 %v648
        %v686 = vunpack.c.l.b16 %v649
        %v687 = vunpack.c.h.b16 %v649
        %v688 = vunpack.c.l.b16 %v650
        %v689 = vunpack.c.h.b16 %v650
        %v690 = vunpack.c.l.b16 %v651
        %v691 = vunpack.c.h.b16 %v651
        %v692 = vunpack.c.l.b16 %v652
        %v693 = vunpack.c.h.b16 %v652
        %v694 = vunpack.c.l.b16 %v653
        %v695 = vunpack.c.h.b16 %v653
        %v696 = vunpack.c.l.b16 %v654
        %v697 = vunpack.c.h.b16 %v654
        %v698 = vunpack.c.l.b16 %v655
        %v699 = vunpack.c.h.b16 %v655
        %v700 = vunpack.c.l.b16 %v656
        %v701 = vunpack.c.h.b16 %v656
        %v702 = vunpack.c.l.b16 %v657
        %v703 = vunpack.c.h.b16 %v657
        %v704 = vunpack.c.l.b16 %v658
        %v705 = vunpack.c.h.b16 %v658
        %v706 = vunpack.c.l.b16 %v659
        %v707 = vunpack.c.h.b16 %v659
        %v708 = vpack.c.b16 %v678, %v676
        %v709 = vpack.c.b16 %v679, %v677
        %v710 = vpack.c.b16 %v682, %v680
        %v711 = vpack.c.b16 %v683, %v681
        %v712 = vpack.c.b16 %v686, %v684
        %v713 = vpack.c.b16 %v687, %v685
        %v714 = vpack.c.b16 %v690, %v688
        %v715 = vpack.c.b16 %v691, %v689
        %v716 = vpack.c.b16 %v694, %v692
        %v717 = vpack.c.b16 %v695, %v693
        %v718 = vpack.c.b16 %v698, %v696
        %v719 = vpack.c.b16 %v699, %v697
        %v720 = vpack.c.b16 %v702, %v700
        %v721 = vpack.c.b16 %v703, %v701
        %v722 = vpack.c.b16 %v706, %v704
        %v723 = vpack.c.b16 %v707, %v705
        %740 = vmatprep.subr.bf16.mxu0 %v709
        %741 = vmatpush1.bf16.msra.mxu0 %v708
        %742 = vmatprep.subr.bf16.mxu0 %v711
        %743 = vmatpush1.bf16.msra.mxu0 %v710
        %744 = vmatprep.subr.bf16.mxu0 %v713
        %745 = vmatpush1.bf16.msra.mxu0 %v712
        %746 = vmatprep.subr.bf16.mxu0 %v715
        %747 = vmatpush1.bf16.msra.mxu0 %v714
        %748 = vmatprep.subr.bf16.mxu0 %v717
        %749 = vmatpush1.bf16.msra.mxu0 %v716
        %750 = vmatprep.subr.bf16.mxu0 %v719
        %751 = vmatpush1.bf16.msra.mxu0 %v718
        %752 = vmatprep.subr.bf16.mxu0 %v721
        %753 = vmatpush1.bf16.msra.mxu0 %v720
        %754 = vmatprep.subr.bf16.mxu0 %v723
        %755 = vmatpush1.bf16.msra.mxu0 %v722
        %756 = vmatprep.subr.bf16.mxu0 0
        %757 = vmatpush1.bf16.msra.mxu0 0
        %758 = vmatprep.subr.bf16.mxu0 0
        %759 = vmatpush1.bf16.msra.mxu0 0
        %760 = vmatprep.subr.bf16.mxu0 0
        %761 = vmatpush1.bf16.msra.mxu0 0
        %762 = vmatprep.subr.bf16.mxu0 0
        %763 = vmatpush1.bf16.msra.mxu0 0
        %764 = vmatprep.subr.bf16.mxu0 0
        %765 = vmatpush1.bf16.msra.mxu0 0
        %766 = vmatprep.subr.bf16.mxu0 0
        %767 = vmatpush1.bf16.msra.mxu0 0
        %768 = vmatprep.subr.bf16.mxu0 0
        %769 = vmatpush1.bf16.msra.mxu0 0
        %770 = vmatprep.subr.bf16.mxu0 0
        %771 = vmatpush1.bf16.msra.mxu0 0
        %772 = vmatprep.mubr.bf16.mxu0 0
        %773 = vmatmul.mubr.bf16.gmra.mrb[0].mxu0 %v642
        %v774 = vpop.f32.mrb[0].mxu0
        %v775 = vadd.f32 0.0, %v774
        %v776 = vpop.f32.mrb[0].mxu0
        %v777 = vadd.f32 0.0, %v776
        %v778 = vpop.f32.mrb[0].mxu0
        %v779 = vadd.f32 0.0, %v778
        %v780 = vpop.f32.mrb[0].mxu0
        %v781 = vadd.f32 0.0, %v780
        %782 = vdwg.mxu0
        %v783 = vadd.f32 %v632, %v775
        %v784 = vadd.f32 %v634, %v777
        %v785 = vadd.f32 %v636, %v779
        %v786 = vadd.f32 %v638, %v781
        %v787 = vld [vmem:[%s3] sm:$0x3]
        %v789 = vlaneseq
        %v790 = vshrl.u32 %v789, 7
        %v791 = vsub.s32 0, %v790
        %v792 = vrot.slane %v787, %v791
        %v793 = vlaneseq
        %v794 = vshrl.u32 %v793, 7
        %v795 = vsub.s32 1, %v794
        %v796 = vrot.slane %v787, %v795
        %v799 = vadd.f32 %v783, %v792
        %v800 = vadd.f32 %v784, %v796
        %v801 = vadd.f32 %v785, %v792
        %v802 = vadd.f32 %v786, %v796
        %v803 = vadd.f32 %v799, %v801
        %v804 = vrot.slane %v803, 4
        %v805 = vadd.f32 %v803, %v804
        %v806 = vrot.slane %v805, 2
        %v807 = vadd.f32 %v805, %v806
        %v808 = vrot.slane %v807, 1
        %v809 = vadd.f32 %v807, %v808
        %v810 = vadd.f32 %v800, %v802
        %v811 = vrot.slane %v810, 4
        %v812 = vadd.f32 %v810, %v811
        %v813 = vrot.slane %v812, 2
        %v814 = vadd.f32 %v812, %v813
        %v815 = vrot.slane %v814, 1
        %v816 = vadd.f32 %v814, %v815
        %v817 = vrcp.pop 16.0
        %v818 = vmul.f32 %v809, %v817
        %v819 = vmul.f32 %v816, %v817
        %v820 = vld [vmem:[%s4] sm:$0xff]
        %v821 = vld [vmem:[%s4 + $0x8] sm:$0xff]
        %v822 = vld [vmem:[%s4 + $0x10] sm:$0xff]
        %v823 = vld [vmem:[%s4 + $0x18] sm:$0xff]
        %v824 = vld [vmem:[%s4 + $0x20] sm:$0xff]
        %v825 = vld [vmem:[%s4 + $0x28] sm:$0xff]
        %v826 = vld [vmem:[%s4 + $0x30] sm:$0xff]
        %v827 = vld [vmem:[%s4 + $0x38] sm:$0xff]
        %v828 = vld [vmem:[%s4 + $0x40] sm:$0xff]
        %v829 = vld [vmem:[%s4 + $0x48] sm:$0xff]
        %v830 = vld [vmem:[%s4 + $0x50] sm:$0xff]
        %v831 = vld [vmem:[%s4 + $0x58] sm:$0xff]
        %v832 = vld [vmem:[%s4 + $0x60] sm:$0xff]
        %v833 = vld [vmem:[%s4 + $0x68] sm:$0xff]
        %v834 = vld [vmem:[%s4 + $0x70] sm:$0xff]
        %v835 = vld [vmem:[%s4 + $0x78] sm:$0xff]
        %v836 = vld [vmem:[%s4 + $0x80] sm:$0xff]
        %v837 = vld [vmem:[%s4 + $0x88] sm:$0xff]
        %v838 = vld [vmem:[%s4 + $0x90] sm:$0xff]
        %v839 = vld [vmem:[%s4 + $0x98] sm:$0xff]
        %v840 = vld [vmem:[%s4 + $0xa0] sm:$0xff]
        %v841 = vld [vmem:[%s4 + $0xa8] sm:$0xff]
        %v842 = vld [vmem:[%s4 + $0xb0] sm:$0xff]
        %v843 = vld [vmem:[%s4 + $0xb8] sm:$0xff]
        %v844 = vld [vmem:[%s4 + $0xc0] sm:$0xff]
        %v845 = vld [vmem:[%s4 + $0xc8] sm:$0xff]
        %v846 = vld [vmem:[%s4 + $0xd0] sm:$0xff]
        %v847 = vld [vmem:[%s4 + $0xd8] sm:$0xff]
        %v848 = vld [vmem:[%s4 + $0xe0] sm:$0xff]
        %v849 = vld [vmem:[%s4 + $0xe8] sm:$0xff]
        %v850 = vld [vmem:[%s4 + $0xf0] sm:$0xff]
        %v851 = vld [vmem:[%s4 + $0xf8] sm:$0xff]
        %852 = vmatprep.subr.mxu0 0.0
        %853 = vmatpush1.msra.mxu0 %v820
        %854 = vmatprep.subr.mxu0 0.0
        %855 = vmatpush1.msra.mxu0 %v821
        %856 = vmatprep.subr.mxu0 0.0
        %857 = vmatpush1.msra.mxu0 %v822
        %858 = vmatprep.subr.mxu0 0.0
        %859 = vmatpush1.msra.mxu0 %v823
        %860 = vmatprep.subr.mxu0 0.0
        %861 = vmatpush1.msra.mxu0 %v824
        %862 = vmatprep.subr.mxu0 0.0
        %863 = vmatpush1.msra.mxu0 %v825
        %864 = vmatprep.subr.mxu0 0.0
        %865 = vmatpush1.msra.mxu0 %v826
        %866 = vmatprep.subr.mxu0 0.0
        %867 = vmatpush1.msra.mxu0 %v827
        %868 = vmatprep.subr.mxu0 0.0
        %869 = vmatpush1.msra.mxu0 %v828
        %870 = vmatprep.subr.mxu0 0.0
        %871 = vmatpush1.msra.mxu0 %v829
        %872 = vmatprep.subr.mxu0 0.0
        %873 = vmatpush1.msra.mxu0 %v830
        %874 = vmatprep.subr.mxu0 0.0
        %875 = vmatpush1.msra.mxu0 %v831
        %876 = vmatprep.subr.mxu0 0.0
        %877 = vmatpush1.msra.mxu0 %v832
        %878 = vmatprep.subr.mxu0 0.0
        %879 = vmatpush1.msra.mxu0 %v833
        %880 = vmatprep.subr.mxu0 0.0
        %881 = vmatpush1.msra.mxu0 %v834
        %882 = vmatprep.subr.mxu0 0.0
        %883 = vmatpush1.msra.mxu0 %v835
        %884 = vmatprep.subr.mxu0 0.0
        %885 = vmatpush1.msra.mxu0 %v836
        %886 = vmatprep.subr.mxu0 0.0
        %887 = vmatpush1.msra.mxu0 %v837
        %888 = vmatprep.subr.mxu0 0.0
        %889 = vmatpush1.msra.mxu0 %v838
        %890 = vmatprep.subr.mxu0 0.0
        %891 = vmatpush1.msra.mxu0 %v839
        %892 = vmatprep.subr.mxu0 0.0
        %893 = vmatpush1.msra.mxu0 %v840
        %894 = vmatprep.subr.mxu0 0.0
        %895 = vmatpush1.msra.mxu0 %v841
        %896 = vmatprep.subr.mxu0 0.0
        %897 = vmatpush1.msra.mxu0 %v842
        %898 = vmatprep.subr.mxu0 0.0
        %899 = vmatpush1.msra.mxu0 %v843
        %900 = vmatprep.subr.mxu0 0.0
        %901 = vmatpush1.msra.mxu0 %v844
        %902 = vmatprep.subr.mxu0 0.0
        %903 = vmatpush1.msra.mxu0 %v845
        %904 = vmatprep.subr.mxu0 0.0
        %905 = vmatpush1.msra.mxu0 %v846
        %906 = vmatprep.subr.mxu0 0.0
        %907 = vmatpush1.msra.mxu0 %v847
        %908 = vmatprep.subr.mxu0 0.0
        %909 = vmatpush1.msra.mxu0 %v848
        %910 = vmatprep.subr.mxu0 0.0
        %911 = vmatpush1.msra.mxu0 %v849
        %912 = vmatprep.subr.mxu0 0.0
        %913 = vmatpush1.msra.mxu0 %v850
        %914 = vmatprep.subr.mxu0 0.0
        %915 = vmatpush1.msra.mxu0 %v851
        %916 = vmatprep.mubr.f32.mxu0 %v819
        %917 = vmatmul.mubr.f32.gmra.mrb[0].mxu0 %v818
        %v918 = vpop.f32.mrb[0].mxu0
        %v919 = vadd.f32 0.0, %v918
        %v920 = vpop.f32.mrb[0].mxu0
        %921 = vdwg.mxu0
        %v922 = vmax.f32 %v919, 0.0
        %v923 = vld [vmem:[%s5] sm:$0xff]
        %v925 = vcombine.high %v923, %v923
        %vm926 = vcmask 31744
        %v928 = vsel %vm926, %v922, 0
        %vm930 = vcmask 1043456
        %v931 = vsel %vm930, %v923, 0
        %v933 = vsel %vm930, %v925, 0
        %935 = vmatprep.subr.mxu0 %v933
        %936 = vmatpush1.msra.mxu0 %v931
        %937 = vmatprep.subr.mxu0 0.0
        %938 = vmatpush1.msra.mxu0 0.0
        %939 = vmatprep.subr.mxu0 0.0
        %940 = vmatpush1.msra.mxu0 0.0
        %941 = vmatprep.subr.mxu0 0.0
        %942 = vmatpush1.msra.mxu0 0.0
        %943 = vmatprep.subr.mxu0 0.0
        %944 = vmatpush1.msra.mxu0 0.0
        %945 = vmatprep.subr.mxu0 0.0
        %946 = vmatpush1.msra.mxu0 0.0
        %947 = vmatprep.subr.mxu0 0.0
        %948 = vmatpush1.msra.mxu0 0.0
        %949 = vmatprep.subr.mxu0 0.0
        %950 = vmatpush1.msra.mxu0 0.0
        %951 = vmatprep.subr.mxu0 0.0
        %952 = vmatpush1.msra.mxu0 0.0
        %953 = vmatprep.subr.mxu0 0.0
        %954 = vmatpush1.msra.mxu0 0.0
        %955 = vmatprep.subr.mxu0 0.0
        %956 = vmatpush1.msra.mxu0 0.0
        %957 = vmatprep.subr.mxu0 0.0
        %958 = vmatpush1.msra.mxu0 0.0
        %959 = vmatprep.subr.mxu0 0.0
        %960 = vmatpush1.msra.mxu0 0.0
        %961 = vmatprep.subr.mxu0 0.0
        %962 = vmatpush1.msra.mxu0 0.0
        %963 = vmatprep.subr.mxu0 0.0
        %964 = vmatpush1.msra.mxu0 0.0
        %965 = vmatprep.subr.mxu0 0.0
        %966 = vmatpush1.msra.mxu0 0.0
        %967 = vmatprep.subr.mxu0 0.0
        %968 = vmatpush1.msra.mxu0 0.0
        %969 = vmatprep.subr.mxu0 0.0
        %970 = vmatpush1.msra.mxu0 0.0
        %971 = vmatprep.subr.mxu0 0.0
        %972 = vmatpush1.msra.mxu0 0.0
        %973 = vmatprep.subr.mxu0 0.0
        %974 = vmatpush1.msra.mxu0 0.0
        %975 = vmatprep.subr.mxu0 0.0
        %976 = vmatpush1.msra.mxu0 0.0
        %977 = vmatprep.subr.mxu0 0.0
        %978 = vmatpush1.msra.mxu0 0.0
        %979 = vmatprep.subr.mxu0 0.0
        %980 = vmatpush1.msra.mxu0 0.0
        %981 = vmatprep.subr.mxu0 0.0
        %982 = vmatpush1.msra.mxu0 0.0
        %983 = vmatprep.subr.mxu0 0.0
        %984 = vmatpush1.msra.mxu0 0.0
        %985 = vmatprep.subr.mxu0 0.0
        %986 = vmatpush1.msra.mxu0 0.0
        %987 = vmatprep.subr.mxu0 0.0
        %988 = vmatpush1.msra.mxu0 0.0
        %989 = vmatprep.subr.mxu0 0.0
        %990 = vmatpush1.msra.mxu0 0.0
        %991 = vmatprep.subr.mxu0 0.0
        %992 = vmatpush1.msra.mxu0 0.0
        %993 = vmatprep.subr.mxu0 0.0
        %994 = vmatpush1.msra.mxu0 0.0
        %995 = vmatprep.subr.mxu0 0.0
        %996 = vmatpush1.msra.mxu0 0.0
        %997 = vmatprep.subr.mxu0 0.0
        %998 = vmatpush1.msra.mxu0 0.0
        %999 = vmatprep.mubr.f32.mxu0 0.0
        %1000 = vmatmul.mubr.f32.gmra.mrb[0].mxu0 %v928
        %v1001 = vpop.f32.mrb[0].mxu0
        %v1002 = vadd.f32 0.0, %v1001
        %v1003 = vpop.f32.mrb[0].mxu0
        %v1004 = vadd.f32 0.0, %v1003
        %1005 = vdwg.mxu0
        %v1006 = vxor.u32 %v1002, 2147483648
        %v1007 = vxor.u32 %v1004, 2147483648
        %v1008 = vmul.f32 %v1006, 1.442695
        %v1009 = vpow.pop %v1008
        %v1010 = vmul.f32 %v1007, 1.442695
        %v1011 = vpow.pop %v1010
        %v1012 = vadd.f32 %v1009, 1.0
        %v1013 = vadd.f32 %v1011, 1.0
        %v1014 = vrcp.pop %v1012
        %v1015 = vmul.f32 1.0, %v1014
        %v1016 = vrcp.pop %v1013
        %v1017 = vmul.f32 1.0, %v1016
        %v1018 = vlaneseq
        %v1019 = vshrl.u32 %v1018, 7
        %v1020 = vsub.s32 0, %v1019
        %v1021 = vrot.slane %v1015, %v1020
        %v1022 = vlaneseq
        %v1023 = vshrl.u32 %v1022, 7
        %v1024 = vsub.s32 0, %v1023
        %v1025 = vrot.slane %v1017, %v1024
        %v1026 = vmul.f32 %v799, %v1021
        %v1027 = vmul.f32 %v800, %v1025
        %v1028 = vmul.f32 %v801, %v1021
        %v1029 = vmul.f32 %v802, %v1025
        %v1030 = vmax.f32 %v1026, 0.0
        %v1031 = vmax.f32 %v1027, 0.0
        %v1032 = vmax.f32 %v1028, 0.0
        %v1033 = vmax.f32 %v1029, 0.0
        %v1034 = vlaneseq
        %vm1035 = vcmp.ge.s32.totalorder %v1034, 0
        %vm1036 = vcmp.lt.s32.totalorder %v1034, 256
        %vm1037 = vmand %vm1035, %vm1036
        %1038 = vst.msk [vmem:[#allocation2] ss:$8 sm:$0x3] %vm1037, 0.0
        %1039 = vst.msk [vmem:[#allocation2] ss:$8 sm:$0x0] %vm1037, 0.0
        %s1040 = scalar_lea.vmem [#allocation2], 33
        %1041 = vst.msk [vmem:[%s1040] ss:$8 sm:$0x3] %vm1037, 0.0
        %1042 = vst.msk [vmem:[%s1040] ss:$8 sm:$0x0] %vm1037, 0.0
        %vm1047 = vcmask 1040384
        %v1048 = vrot.slane %v1030, 7
        %v1049 = vrot.slane %v1031, 7
        %v1050 = vrot.slane %v1032, 7
        %v1051 = vsel %vm1047, %v1048, %v1050
        %v1052 = vrot.slane %v1033, 7
        %v1053 = vsel %vm1047, %v1049, %v1052
        %1060 = vst [vmem:[#allocation2] sm:$0xfe] %v1048
        %1061 = vst [vmem:[#allocation2 + $0x8] sm:$0xfe] %v1049
        %1062 = vst [vmem:[#allocation2 + $0x10] sm:$0xff] %v1051
        %1063 = vst [vmem:[#allocation2 + $0x18] sm:$0xff] %v1053
        %1064 = vst [vmem:[#allocation2 + $0x20] sm:$0x1] %v1050
        %1065 = vst [vmem:[#allocation2 + $0x28] sm:$0x1] %v1052
        %v1066 = vpack.c.bf16 %v1032, %v1030
        %v1067 = vpack.c.bf16 %v1033, %v1031
        %s1068 = scalar_lea.vmem [#allocation6], 128
        %v1069 = vld [vmem:[%s1068] sm:$0xf]
        %v1070 = vld [vmem:[%s1068 + $0x4] sm:$0xf]
        %v1071 = vld [vmem:[%s1068 + $0x8] sm:$0xf]
        %v1072 = vld [vmem:[%s1068 + $0xc] sm:$0xf]
        %v1073 = vld [vmem:[%s1068 + $0x10] sm:$0xf]
        %v1074 = vld [vmem:[%s1068 + $0x14] sm:$0xf]
        %v1075 = vld [vmem:[%s1068 + $0x18] sm:$0xf]
        %v1076 = vld [vmem:[%s1068 + $0x1c] sm:$0xf]
        %v1077 = vld [vmem:[%s1068 + $0x20] sm:$0xf]
        %v1078 = vld [vmem:[%s1068 + $0x24] sm:$0xf]
        %v1079 = vld [vmem:[%s1068 + $0x28] sm:$0xf]
        %v1080 = vld [vmem:[%s1068 + $0x2c] sm:$0xf]
        %v1081 = vld [vmem:[%s1068 + $0x30] sm:$0xf]
        %v1082 = vld [vmem:[%s1068 + $0x34] sm:$0xf]
        %v1083 = vld [vmem:[%s1068 + $0x38] sm:$0xf]
        %v1084 = vld [vmem:[%s1068 + $0x3c] sm:$0xf]
        %v1085 = vld [vmem:[%s1068 + $0x40] sm:$0xf]
        %v1086 = vld [vmem:[%s1068 + $0x44] sm:$0xf]
        %v1087 = vld [vmem:[%s1068 + $0x48] sm:$0xf]
        %v1088 = vld [vmem:[%s1068 + $0x4c] sm:$0xf]
        %v1089 = vld [vmem:[%s1068 + $0x50] sm:$0xf]
        %v1090 = vld [vmem:[%s1068 + $0x54] sm:$0xf]
        %v1091 = vld [vmem:[%s1068 + $0x58] sm:$0xf]
        %v1092 = vld [vmem:[%s1068 + $0x5c] sm:$0xf]
        %v1093 = vld [vmem:[%s1068 + $0x60] sm:$0xf]
        %v1094 = vld [vmem:[%s1068 + $0x64] sm:$0xf]
        %v1095 = vld [vmem:[%s1068 + $0x68] sm:$0xf]
        %v1096 = vld [vmem:[%s1068 + $0x6c] sm:$0xf]
        %v1097 = vld [vmem:[%s1068 + $0x70] sm:$0xf]
        %v1098 = vld [vmem:[%s1068 + $0x74] sm:$0xf]
        %v1099 = vld [vmem:[%s1068 + $0x78] sm:$0xf]
        %v1100 = vld [vmem:[%s1068 + $0x7c] sm:$0xf]
        %v1101 = vld [vmem:[#allocation2] sm:$0xff]
        %v1102 = vld [vmem:[#allocation2 + $0x8] sm:$0xff]
        %v1103 = vld [vmem:[#allocation2 + $0x10] sm:$0xff]
        %v1104 = vld [vmem:[#allocation2 + $0x18] sm:$0xff]
        %v1105 = vpack.c.bf16 %v1103, %v1101
        %v1106 = vpack.c.bf16 %v1104, %v1102
        %v1107 = vld [vmem:[#allocation6] sm:$0xf]
        %v1108 = vld [vmem:[#allocation6 + $0x4] sm:$0xf]
        %v1109 = vld [vmem:[#allocation6 + $0x8] sm:$0xf]
        %v1110 = vld [vmem:[#allocation6 + $0xc] sm:$0xf]
        %v1111 = vld [vmem:[#allocation6 + $0x10] sm:$0xf]
        %v1112 = vld [vmem:[#allocation6 + $0x14] sm:$0xf]
        %v1113 = vld [vmem:[#allocation6 + $0x18] sm:$0xf]
        %v1114 = vld [vmem:[#allocation6 + $0x1c] sm:$0xf]
        %v1115 = vld [vmem:[#allocation6 + $0x20] sm:$0xf]
        %v1116 = vld [vmem:[#allocation6 + $0x24] sm:$0xf]
        %v1117 = vld [vmem:[#allocation6 + $0x28] sm:$0xf]
        %v1118 = vld [vmem:[#allocation6 + $0x2c] sm:$0xf]
        %v1119 = vld [vmem:[#allocation6 + $0x30] sm:$0xf]
        %v1120 = vld [vmem:[#allocation6 + $0x34] sm:$0xf]
        %v1121 = vld [vmem:[#allocation6 + $0x38] sm:$0xf]
        %v1122 = vld [vmem:[#allocation6 + $0x3c] sm:$0xf]
        %v1123 = vld [vmem:[#allocation6 + $0x40] sm:$0xf]
        %v1124 = vld [vmem:[#allocation6 + $0x44] sm:$0xf]
        %v1125 = vld [vmem:[#allocation6 + $0x48] sm:$0xf]
        %v1126 = vld [vmem:[#allocation6 + $0x4c] sm:$0xf]
        %v1127 = vld [vmem:[#allocation6 + $0x50] sm:$0xf]
        %v1128 = vld [vmem:[#allocation6 + $0x54] sm:$0xf]
        %v1129 = vld [vmem:[#allocation6 + $0x58] sm:$0xf]
        %v1130 = vld [vmem:[#allocation6 + $0x5c] sm:$0xf]
        %v1131 = vld [vmem:[#allocation6 + $0x60] sm:$0xf]
        %v1132 = vld [vmem:[#allocation6 + $0x64] sm:$0xf]
        %v1133 = vld [vmem:[#allocation6 + $0x68] sm:$0xf]
        %v1134 = vld [vmem:[#allocation6 + $0x6c] sm:$0xf]
        %v1135 = vld [vmem:[#allocation6 + $0x70] sm:$0xf]
        %v1136 = vld [vmem:[#allocation6 + $0x74] sm:$0xf]
        %v1137 = vld [vmem:[#allocation6 + $0x78] sm:$0xf]
        %v1138 = vld [vmem:[#allocation6 + $0x7c] sm:$0xf]
        %v1171 = vunpack.c.l.b16 %v1107
        %v1172 = vunpack.c.l.b16 %v1108
        %v1173 = vunpack.c.l.b16 %v1109
        %v1174 = vunpack.c.l.b16 %v1110
        %v1175 = vunpack.c.l.b16 %v1111
        %v1176 = vunpack.c.l.b16 %v1112
        %v1177 = vunpack.c.l.b16 %v1113
        %v1178 = vunpack.c.l.b16 %v1114
        %v1179 = vunpack.c.l.b16 %v1115
        %v1180 = vunpack.c.l.b16 %v1116
        %v1181 = vunpack.c.l.b16 %v1117
        %v1182 = vunpack.c.l.b16 %v1118
        %v1183 = vunpack.c.l.b16 %v1119
        %v1184 = vunpack.c.l.b16 %v1120
        %v1185 = vunpack.c.l.b16 %v1121
        %v1186 = vunpack.c.l.b16 %v1122
        %v1187 = vunpack.c.l.b16 %v1123
        %v1188 = vunpack.c.l.b16 %v1124
        %v1189 = vunpack.c.l.b16 %v1125
        %v1190 = vunpack.c.l.b16 %v1126
        %v1191 = vunpack.c.l.b16 %v1127
        %v1192 = vunpack.c.l.b16 %v1128
        %v1193 = vunpack.c.l.b16 %v1129
        %v1194 = vunpack.c.l.b16 %v1130
        %v1195 = vunpack.c.l.b16 %v1131
        %v1196 = vunpack.c.l.b16 %v1132
        %v1197 = vunpack.c.l.b16 %v1133
        %v1198 = vunpack.c.l.b16 %v1134
        %v1199 = vunpack.c.l.b16 %v1135
        %v1200 = vunpack.c.l.b16 %v1136
        %v1201 = vunpack.c.l.b16 %v1137
        %v1202 = vunpack.c.l.b16 %v1138
        %v1203 = vpack.c.b16 %v1172, %v1171
        %v1204 = vpack.c.b16 %v1174, %v1173
        %v1205 = vpack.c.b16 %v1176, %v1175
        %v1206 = vpack.c.b16 %v1178, %v1177
        %v1207 = vpack.c.b16 %v1180, %v1179
        %v1208 = vpack.c.b16 %v1182, %v1181
        %v1209 = vpack.c.b16 %v1184, %v1183
        %v1210 = vpack.c.b16 %v1186, %v1185
        %v1211 = vpack.c.b16 %v1188, %v1187
        %v1212 = vpack.c.b16 %v1190, %v1189
        %v1213 = vpack.c.b16 %v1192, %v1191
        %v1214 = vpack.c.b16 %v1194, %v1193
        %v1215 = vpack.c.b16 %v1196, %v1195
        %v1216 = vpack.c.b16 %v1198, %v1197
        %v1217 = vpack.c.b16 %v1200, %v1199
        %v1218 = vpack.c.b16 %v1202, %v1201
        %1235 = vmatprep.subr.bf16.mxu0 0
        %1236 = vmatpush1.bf16.msra.mxu0 %v1203
        %1237 = vmatprep.subr.bf16.mxu0 0
        %1238 = vmatpush1.bf16.msra.mxu0 %v1204
        %1239 = vmatprep.subr.bf16.mxu0 0
        %1240 = vmatpush1.bf16.msra.mxu0 %v1205
        %1241 = vmatprep.subr.bf16.mxu0 0
        %1242 = vmatpush1.bf16.msra.mxu0 %v1206
        %1243 = vmatprep.subr.bf16.mxu0 0
        %1244 = vmatpush1.bf16.msra.mxu0 %v1207
        %1245 = vmatprep.subr.bf16.mxu0 0
        %1246 = vmatpush1.bf16.msra.mxu0 %v1208
        %1247 = vmatprep.subr.bf16.mxu0 0
        %1248 = vmatpush1.bf16.msra.mxu0 %v1209
        %1249 = vmatprep.subr.bf16.mxu0 0
        %1250 = vmatpush1.bf16.msra.mxu0 %v1210
        %1251 = vmatprep.subr.bf16.mxu0 0
        %1252 = vmatpush1.bf16.msra.mxu0 %v1211
        %1253 = vmatprep.subr.bf16.mxu0 0
        %1254 = vmatpush1.bf16.msra.mxu0 %v1212
        %1255 = vmatprep.subr.bf16.mxu0 0
        %1256 = vmatpush1.bf16.msra.mxu0 %v1213
        %1257 = vmatprep.subr.bf16.mxu0 0
        %1258 = vmatpush1.bf16.msra.mxu0 %v1214
        %1259 = vmatprep.subr.bf16.mxu0 0
        %1260 = vmatpush1.bf16.msra.mxu0 %v1215
        %1261 = vmatprep.subr.bf16.mxu0 0
        %1262 = vmatpush1.bf16.msra.mxu0 %v1216
        %1263 = vmatprep.subr.bf16.mxu0 0
        %1264 = vmatpush1.bf16.msra.mxu0 %v1217
        %1265 = vmatprep.subr.bf16.mxu0 0
        %1266 = vmatpush1.bf16.msra.mxu0 %v1218
        %1267 = vmatprep.mubr.bf16.mxu0 %v1106
        %1268 = vmatmul.mubr.bf16.gmra.mrb[0].mxu0 %v1105
        %v1269 = vpop.f32.mrb[0].mxu0
        %v1270 = vadd.f32 0.0, %v1269
        %v1271 = vpop.f32.mrb[0].mxu0
        %v1272 = vpop.f32.mrb[0].mxu0
        %v1273 = vadd.f32 0.0, %v1272
        %v1274 = vpop.f32.mrb[0].mxu0
        %1275 = vdwg.mxu0
        %v1308 = vunpack.c.l.b16 %v1069
        %v1309 = vunpack.c.l.b16 %v1070
        %v1310 = vunpack.c.l.b16 %v1071
        %v1311 = vunpack.c.l.b16 %v1072
        %v1312 = vunpack.c.l.b16 %v1073
        %v1313 = vunpack.c.l.b16 %v1074
        %v1314 = vunpack.c.l.b16 %v1075
        %v1315 = vunpack.c.l.b16 %v1076
        %v1316 = vunpack.c.l.b16 %v1077
        %v1317 = vunpack.c.l.b16 %v1078
        %v1318 = vunpack.c.l.b16 %v1079
        %v1319 = vunpack.c.l.b16 %v1080
        %v1320 = vunpack.c.l.b16 %v1081
        %v1321 = vunpack.c.l.b16 %v1082
        %v1322 = vunpack.c.l.b16 %v1083
        %v1323 = vunpack.c.l.b16 %v1084
        %v1324 = vunpack.c.l.b16 %v1085
        %v1325 = vunpack.c.l.b16 %v1086
        %v1326 = vunpack.c.l.b16 %v1087
        %v1327 = vunpack.c.l.b16 %v1088
        %v1328 = vunpack.c.l.b16 %v1089
        %v1329 = vunpack.c.l.b16 %v1090
        %v1330 = vunpack.c.l.b16 %v1091
        %v1331 = vunpack.c.l.b16 %v1092
        %v1332 = vunpack.c.l.b16 %v1093
        %v1333 = vunpack.c.l.b16 %v1094
        %v1334 = vunpack.c.l.b16 %v1095
        %v1335 = vunpack.c.l.b16 %v1096
        %v1336 = vunpack.c.l.b16 %v1097
        %v1337 = vunpack.c.l.b16 %v1098
        %v1338 = vunpack.c.l.b16 %v1099
        %v1339 = vunpack.c.l.b16 %v1100
        %v1340 = vpack.c.b16 %v1309, %v1308
        %v1341 = vpack.c.b16 %v1311, %v1310
        %v1342 = vpack.c.b16 %v1313, %v1312
        %v1343 = vpack.c.b16 %v1315, %v1314
        %v1344 = vpack.c.b16 %v1317, %v1316
        %v1345 = vpack.c.b16 %v1319, %v1318
        %v1346 = vpack.c.b16 %v1321, %v1320
        %v1347 = vpack.c.b16 %v1323, %v1322
        %v1348 = vpack.c.b16 %v1325, %v1324
        %v1349 = vpack.c.b16 %v1327, %v1326
        %v1350 = vpack.c.b16 %v1329, %v1328
        %v1351 = vpack.c.b16 %v1331, %v1330
        %v1352 = vpack.c.b16 %v1333, %v1332
        %v1353 = vpack.c.b16 %v1335, %v1334
        %v1354 = vpack.c.b16 %v1337, %v1336
        %v1355 = vpack.c.b16 %v1339, %v1338
        %1372 = vmatprep.subr.bf16.mxu0 0
        %1373 = vmatpush1.bf16.msra.mxu0 %v1340
        %1374 = vmatprep.subr.bf16.mxu0 0
        %1375 = vmatpush1.bf16.msra.mxu0 %v1341
        %1376 = vmatprep.subr.bf16.mxu0 0
        %1377 = vmatpush1.bf16.msra.mxu0 %v1342
        %1378 = vmatprep.subr.bf16.mxu0 0
        %1379 = vmatpush1.bf16.msra.mxu0 %v1343
        %1380 = vmatprep.subr.bf16.mxu0 0
        %1381 = vmatpush1.bf16.msra.mxu0 %v1344
        %1382 = vmatprep.subr.bf16.mxu0 0
        %1383 = vmatpush1.bf16.msra.mxu0 %v1345
        %1384 = vmatprep.subr.bf16.mxu0 0
        %1385 = vmatpush1.bf16.msra.mxu0 %v1346
        %1386 = vmatprep.subr.bf16.mxu0 0
        %1387 = vmatpush1.bf16.msra.mxu0 %v1347
        %1388 = vmatprep.subr.bf16.mxu0 0
        %1389 = vmatpush1.bf16.msra.mxu0 %v1348
        %1390 = vmatprep.subr.bf16.mxu0 0
        %1391 = vmatpush1.bf16.msra.mxu0 %v1349
        %1392 = vmatprep.subr.bf16.mxu0 0
        %1393 = vmatpush1.bf16.msra.mxu0 %v1350
        %1394 = vmatprep.subr.bf16.mxu0 0
        %1395 = vmatpush1.bf16.msra.mxu0 %v1351
        %1396 = vmatprep.subr.bf16.mxu0 0
        %1397 = vmatpush1.bf16.msra.mxu0 %v1352
        %1398 = vmatprep.subr.bf16.mxu0 0
        %1399 = vmatpush1.bf16.msra.mxu0 %v1353
        %1400 = vmatprep.subr.bf16.mxu0 0
        %1401 = vmatpush1.bf16.msra.mxu0 %v1354
        %1402 = vmatprep.subr.bf16.mxu0 0
        %1403 = vmatpush1.bf16.msra.mxu0 %v1355
        %1404 = vmatprep.mubr.bf16.mxu0 %v1067
        %1405 = vmatmul.mubr.bf16.gmra.mrb[0].mxu0 %v1066
        %v1406 = vpop.f32.mrb[0].mxu0
        %v1407 = vadd.f32 %v1270, %v1406
        %v1408 = vpop.f32.mrb[0].mxu0
        %v1409 = vpop.f32.mrb[0].mxu0
        %v1410 = vadd.f32 %v1273, %v1409
        %v1411 = vpop.f32.mrb[0].mxu0
        %1412 = vdwg.mxu0
        %v1413 = vld [vmem:[#allocation2] sm:$0xfc]
        %v1414 = vld [vmem:[#allocation2 + $0x8] sm:$0xfc]
        %v1415 = vld [vmem:[#allocation2 + $0x10] sm:$0xff]
        %v1416 = vld [vmem:[#allocation2 + $0x18] sm:$0xff]
        %v1417 = vld [vmem:[#allocation2 + $0x20] sm:$0x3]
        %v1418 = vld [vmem:[#allocation2 + $0x28] sm:$0x3]
        %v1419 = vpack.c.bf16 %v1415, %v1413
        %v1420 = vpack.c.bf16 %v1416, %v1414
        %v1421 = vpack.c.bf16 %v1417, %v1417
        %v1422 = vpack.c.bf16 %v1418, %v1418
        %s1423 = scalar_lea.vmem [#allocation6], 256
        %v1424 = vld [vmem:[%s1423] sm:$0xf]
        %v1425 = vld [vmem:[%s1423 + $0x4] sm:$0xf]
        %v1426 = vld [vmem:[%s1423 + $0x8] sm:$0xf]
        %v1427 = vld [vmem:[%s1423 + $0xc] sm:$0xf]
        %v1428 = vld [vmem:[%s1423 + $0x10] sm:$0xf]
        %v1429 = vld [vmem:[%s1423 + $0x14] sm:$0xf]
        %v1430 = vld [vmem:[%s1423 + $0x18] sm:$0xf]
        %v1431 = vld [vmem:[%s1423 + $0x1c] sm:$0xf]
        %v1432 = vld [vmem:[%s1423 + $0x20] sm:$0xf]
        %v1433 = vld [vmem:[%s1423 + $0x24] sm:$0xf]
        %v1434 = vld [vmem:[%s1423 + $0x28] sm:$0xf]
        %v1435 = vld [vmem:[%s1423 + $0x2c] sm:$0xf]
        %v1436 = vld [vmem:[%s1423 + $0x30] sm:$0xf]
        %v1437 = vld [vmem:[%s1423 + $0x34] sm:$0xf]
        %v1438 = vld [vmem:[%s1423 + $0x38] sm:$0xf]
        %v1439 = vld [vmem:[%s1423 + $0x3c] sm:$0xf]
        %v1440 = vld [vmem:[%s1423 + $0x40] sm:$0xf]
        %v1441 = vld [vmem:[%s1423 + $0x44] sm:$0xf]
        %v1442 = vld [vmem:[%s1423 + $0x48] sm:$0xf]
        %v1443 = vld [vmem:[%s1423 + $0x4c] sm:$0xf]
        %v1444 = vld [vmem:[%s1423 + $0x50] sm:$0xf]
        %v1445 = vld [vmem:[%s1423 + $0x54] sm:$0xf]
        %v1446 = vld [vmem:[%s1423 + $0x58] sm:$0xf]
        %v1447 = vld [vmem:[%s1423 + $0x5c] sm:$0xf]
        %v1448 = vld [vmem:[%s1423 + $0x60] sm:$0xf]
        %v1449 = vld [vmem:[%s1423 + $0x64] sm:$0xf]
        %v1450 = vld [vmem:[%s1423 + $0x68] sm:$0xf]
        %v1451 = vld [vmem:[%s1423 + $0x6c] sm:$0xf]
        %v1452 = vld [vmem:[%s1423 + $0x70] sm:$0xf]
        %v1453 = vld [vmem:[%s1423 + $0x74] sm:$0xf]
        %v1454 = vld [vmem:[%s1423 + $0x78] sm:$0xf]
        %v1455 = vld [vmem:[%s1423 + $0x7c] sm:$0xf]
        %vm1460 = vcmask 1046528
        %v1461 = vrot.slane %v1419, 1
        %v1462 = vrot.slane %v1421, 1
        %v1463 = vsel %vm1460, %v1461, %v1462
        %v1464 = vrot.slane %v1420, 1
        %v1465 = vrot.slane %v1422, 1
        %v1466 = vsel %vm1460, %v1464, %v1465
        %v1501 = vunpack.c.l.b16 %v1424
        %v1502 = vunpack.c.l.b16 %v1425
        %v1503 = vunpack.c.l.b16 %v1426
        %v1504 = vunpack.c.l.b16 %v1427
        %v1505 = vunpack.c.l.b16 %v1428
        %v1506 = vunpack.c.l.b16 %v1429
        %v1507 = vunpack.c.l.b16 %v1430
        %v1508 = vunpack.c.l.b16 %v1431
        %v1509 = vunpack.c.l.b16 %v1432
        %v1510 = vunpack.c.l.b16 %v1433
        %v1511 = vunpack.c.l.b16 %v1434
        %v1512 = vunpack.c.l.b16 %v1435
        %v1513 = vunpack.c.l.b16 %v1436
        %v1514 = vunpack.c.l.b16 %v1437
        %v1515 = vunpack.c.l.b16 %v1438
        %v1516 = vunpack.c.l.b16 %v1439
        %v1517 = vunpack.c.l.b16 %v1440
        %v1518 = vunpack.c.l.b16 %v1441
        %v1519 = vunpack.c.l.b16 %v1442
        %v1520 = vunpack.c.l.b16 %v1443
        %v1521 = vunpack.c.l.b16 %v1444
        %v1522 = vunpack.c.l.b16 %v1445
        %v1523 = vunpack.c.l.b16 %v1446
        %v1524 = vunpack.c.l.b16 %v1447
        %v1525 = vunpack.c.l.b16 %v1448
        %v1526 = vunpack.c.l.b16 %v1449
        %v1527 = vunpack.c.l.b16 %v1450
        %v1528 = vunpack.c.l.b16 %v1451
        %v1529 = vunpack.c.l.b16 %v1452
        %v1530 = vunpack.c.l.b16 %v1453
        %v1531 = vunpack.c.l.b16 %v1454
        %v1532 = vunpack.c.l.b16 %v1455
        %v1533 = vpack.c.b16 %v1502, %v1501
        %v1534 = vpack.c.b16 %v1504, %v1503
        %v1535 = vpack.c.b16 %v1506, %v1505
        %v1536 = vpack.c.b16 %v1508, %v1507
        %v1537 = vpack.c.b16 %v1510, %v1509
        %v1538 = vpack.c.b16 %v1512, %v1511
        %v1539 = vpack.c.b16 %v1514, %v1513
        %v1540 = vpack.c.b16 %v1516, %v1515
        %v1541 = vpack.c.b16 %v1518, %v1517
        %v1542 = vpack.c.b16 %v1520, %v1519
        %v1543 = vpack.c.b16 %v1522, %v1521
        %v1544 = vpack.c.b16 %v1524, %v1523
        %v1545 = vpack.c.b16 %v1526, %v1525
        %v1546 = vpack.c.b16 %v1528, %v1527
        %v1547 = vpack.c.b16 %v1530, %v1529
        %v1548 = vpack.c.b16 %v1532, %v1531
        %1565 = vmatprep.subr.bf16.mxu0 0
        %1566 = vmatpush1.bf16.msra.mxu0 %v1533
        %1567 = vmatprep.subr.bf16.mxu0 0
        %1568 = vmatpush1.bf16.msra.mxu0 %v1534
        %1569 = vmatprep.subr.bf16.mxu0 0
        %1570 = vmatpush1.bf16.msra.mxu0 %v1535
        %1571 = vmatprep.subr.bf16.mxu0 0
        %1572 = vmatpush1.bf16.msra.mxu0 %v1536
        %1573 = vmatprep.subr.bf16.mxu0 0
        %1574 = vmatpush1.bf16.msra.mxu0 %v1537
        %1575 = vmatprep.subr.bf16.mxu0 0
        %1576 = vmatpush1.bf16.msra.mxu0 %v1538
        %1577 = vmatprep.subr.bf16.mxu0 0
        %1578 = vmatpush1.bf16.msra.mxu0 %v1539
        %1579 = vmatprep.subr.bf16.mxu0 0
        %1580 = vmatpush1.bf16.msra.mxu0 %v1540
        %1581 = vmatprep.subr.bf16.mxu0 0
        %1582 = vmatpush1.bf16.msra.mxu0 %v1541
        %1583 = vmatprep.subr.bf16.mxu0 0
        %1584 = vmatpush1.bf16.msra.mxu0 %v1542
        %1585 = vmatprep.subr.bf16.mxu0 0
        %1586 = vmatpush1.bf16.msra.mxu0 %v1543
        %1587 = vmatprep.subr.bf16.mxu0 0
        %1588 = vmatpush1.bf16.msra.mxu0 %v1544
        %1589 = vmatprep.subr.bf16.mxu0 0
        %1590 = vmatpush1.bf16.msra.mxu0 %v1545
        %1591 = vmatprep.subr.bf16.mxu0 0
        %1592 = vmatpush1.bf16.msra.mxu0 %v1546
        %1593 = vmatprep.subr.bf16.mxu0 0
        %1594 = vmatpush1.bf16.msra.mxu0 %v1547
        %1595 = vmatprep.subr.bf16.mxu0 0
        %1596 = vmatpush1.bf16.msra.mxu0 %v1548
        %1597 = vmatprep.mubr.bf16.mxu0 %v1466
        %1598 = vmatmul.mubr.bf16.gmra.mrb[0].mxu0 %v1463
        %v1599 = vpop.f32.mrb[0].mxu0
        %v1600 = vadd.f32 0.0, %v1599
        %v1601 = vpop.f32.mrb[0].mxu0
        %v1602 = vpop.f32.mrb[0].mxu0
        %v1603 = vadd.f32 0.0, %v1602
        %v1604 = vpop.f32.mrb[0].mxu0
        %1605 = vdwg.mxu0
        %v1606 = vadd.f32 %v1407, %v1600
        %v1607 = vadd.f32 %v1410, %v1603
        %v1608 = vld [vmem:[%s7] sm:$0x1]
        %v1610 = vlaneseq
        %v1611 = vshrl.u32 %v1610, 7
        %v1612 = vsub.s32 0, %v1611
        %v1613 = vrot.slane %v1608, %v1612
        %v1615 = vadd.f32 %v1606, %v1613
        %v1616 = vadd.f32 %v1607, %v1613
        %v1617 = vld [vmem:[%s353] sm:$0xff]
        %v1618 = vld [vmem:[%s353 + $0x8] sm:$0xff]
        %v1619 = vadd.f32 %v1615, %v1617
        %v1620 = vadd.f32 %v1616, %v1618
        %v1621 = vmax.f32 %v1619, 0.0
        %v1622 = vmax.f32 %v1620, 0.0
        %1623 = vst [vmem:[%s343] sm:$0xff] %v1621
        %1624 = vst [vmem:[%s343 + $0x8] sm:$0xff] %v1622
        %s1625 = sand.u32 %s210, 1
        %s1626 = scalar_lea.sflag [#allocation5], %s1625
        %s1627 = sand.u32 %s210, 1
        %s1628 = smul.addr %s1627, 16
        %s1629 = scalar_lea.vmem [#allocation8], %s1628
        // Predicated region
        $region61: #{tpu_custom_call.1} parent=51 // pred_check
          %p1630 = pneg %p220
        $region62: #{tpu_custom_call.1} parent=51 // pred_check_branch
          %1632 = sbr.rel (%p1630) target = $region64
        $region63: #{tpu_custom_call.1} parent=51 // pred_region
          %s1634 = ssub.s32 256, 256
          %1635 = vsyncadd %s1626, %s1634
          %s1636 = smul.addr %s24, 2
          %s1637 = smul.addr %s1636, 128
          %s1638 = scalar_lea.hbm %s8, %s1637
          %s1639 = sshll.u32 %s1629, 4
          %s1640 = int_to_ptr.vmem [resolvable:$true] %s1639
          %1645 = dma.vmem_to_hbm [thread:$0]  %s1640, 256, %s1638, %s1626, 128, 128, 8
        $region64: #{tpu_custom_call.1} parent=51 // pred_fallthru
          _
      $region52: #{tpu_custom_call.1} parent=5 // pred_fallthru
        _
      %p1646 = scmp.le.s32.totalorder 2, %s19
      // Predicated region
      $region65: #{tpu_custom_call.1} parent=5 // pred_check
        %p1647 = pneg %p1646
      $region66: #{tpu_custom_call.1} parent=5 // pred_check_branch
        %1649 = sbr.rel (%p1647) target = $region68
      $region67: #{tpu_custom_call.1} parent=5 // pred_region
        %s1650 = ssub.s32 %s19, 2
        // Predicated region
        $region69: #{tpu_custom_call.1} parent=67 // pred_check
          %p1651 = pneg %p226
        $region70: #{tpu_custom_call.1} parent=67 // pred_check_branch
          %1653 = sbr.rel (%p1651) target = $region72
        $region71: #{tpu_custom_call.1} parent=67 // pred_region
          %s1654 = sand.u32 %s211, 1
          %s1655 = scalar_lea.sflag [#allocation5], %s1654
          %s1656 = sand.u32 %s211, 1
          %s1657 = smul.addr %s1656, 16
          %s1658 = scalar_lea.vmem [#allocation8], %s1657
          %1659 = dma.done %s1655, 256
        $region72: #{tpu_custom_call.1} parent=67 // pred_fallthru
          _
      $region68: #{tpu_custom_call.1} parent=5 // pred_fallthru
        _
    $region6: #{tpu_custom_call.1} parent=1 // loop_footer
      %s23 = sadd.s32 1, %s19
    $region7: #{tpu_custom_call.1} parent=1 // loop_footer_branch
      %18 = sbr.rel target = $region3
    $region8: #{tpu_custom_call.1} parent=1 // loop_exit
      _
    %1660 = vsyncpa [#allocation4], 1
    %s1661 = scalar_lea.sflag [#allocation4], 1
    %1662 = vsyncpa %s1661, 1
    %1663 = vsyncpa [#allocation7], 1
    %1664 = vsyncpa [#allocation5], 1
    %s1665 = scalar_lea.sflag [#allocation5], 1
    %1666 = vsyncpa %s1665, 1

</llo_original>
